<compile_context>
chip_gen: v7x
topology: tpu7x:2x2x1
jax: 0.10.0
libtpu: 0.0.40
codegen_flags: <defaults>
</compile_context>

<pallas_src>
import functools

import jax
import jax.numpy as jnp
from jax import lax
from jax.experimental import pallas as pl
from jax.experimental.pallas import tpu as pltpu

BN_EPS = 1e-5
KSIZE = 3


# ---------------------------------------------------------------------------
# In-kernel helpers (operate on values loaded from VMEM refs).
# ---------------------------------------------------------------------------
def _im2col(x, offsets, sp):
    """Stack the 9 lane-shifted copies of x (C, Sp) -> (9*C, Sp).

    pltpu.roll puts the shift on the XLU slot (no slice/concat VMEM copies).
    Wrapped lanes only ever land on padding-ring / lane-tail positions, which
    are masked to zero by the caller, so the wrap is harmless."""
    parts = []
    for off in offsets:
        s = (-off) % sp
        parts.append(x if s == 0 else pltpu.roll(x, shift=s, axis=1))
    return jnp.concatenate(parts, axis=0)


def _conv_mxu(x, w_ref, offsets, sp):
    """3x3 'same' conv of x (Cin, Sp) with packed weights w_ref (Cout, 9*Cin).

    One im2col stack + one MXU dot (bf16 operands, f32 accumulation)."""
    col = _im2col(x, offsets, sp).astype(jnp.bfloat16)
    return jnp.dot(w_ref[...], col, preferred_element_type=jnp.float32)


def _write_stats(stats_ref, y):
    # Per-image, per-channel (sum, sumsq) partials for the global training-mode
    # BN stats; emitted as ONE (C, 2) tile store per grid step.
    stats_ref[0] = jnp.concatenate(
        [jnp.sum(y, axis=1, keepdims=True),
         jnp.sum(y * y, axis=1, keepdims=True)], axis=1)


# ---------------------------------------------------------------------------
# Kernels (one grid step == one image; grid axis is the batch, "parallel").
# ---------------------------------------------------------------------------
def _conv_stats_kernel(x_ref, w_ref, mask_ref, y_ref, stats_ref, *, offsets, sp):
    """y = conv3x3(x, W1) (bias dropped: cancels under training-mode BN) + stats."""
    x = x_ref[0].astype(jnp.float32)                  # (Cin, Sp), ring/tail already zero
    y = _conv_mxu(x, w_ref, offsets, sp) * mask_ref[...]
    y_ref[0] = y.astype(y_ref.dtype)
    _write_stats(stats_ref, y)


def _gauss_fused_kernel(y1_ref, s1_ref, t1_ref, ksum_ref, wgs_ref, wgf_ref,
                        mask_ref, y2_ref, stats_ref, *, offsets, sp, c):
    """f = ReLU(BN(y1));  score = depthwise3x3(f, K_sum)  (== atten conv summed
    over its 9 output channels);  y2 = conv3x3(concat(score, f), Wg) expressed
    as two MXU half-dots so the concat is never materialized.  Emits stats(y2)."""
    mask = mask_ref[...]
    f = jnp.maximum(s1_ref[...] * y1_ref[0].astype(jnp.float32) + t1_ref[...],
                    0.0) * mask                       # (C, Sp)
    colf = _im2col(f, offsets, sp)                    # (9C, Sp) f32, reused twice
    # Shared-kernel depthwise conv: 9 SMEM-scalar broadcast FMAs on the VPU.
    score = jnp.zeros((c, sp), jnp.float32)
    for t in range(KSIZE * KSIZE):
        score = score + ksum_ref[t] * colf[t * c:(t + 1) * c]
    score = score * mask                              # zero the padding ring
    cols = _im2col(score, offsets, sp).astype(jnp.bfloat16)
    y2 = (jnp.dot(wgf_ref[...], colf.astype(jnp.bfloat16),
                  preferred_element_type=jnp.float32)            # Wg[:, C:] (f half)
          + jnp.dot(wgs_ref[...], cols,
                    preferred_element_type=jnp.float32)) * mask  # Wg[:, :C] (score half)
    y2_ref[0] = y2.astype(y2_ref.dtype)
    _write_stats(stats_ref, y2)


def _sum_conv_stats_kernel(y1_ref, s1_ref, t1_ref, y2_ref, s2_ref, t2_ref,
                           w_ref, mask_ref, y3_ref, stats_ref, *, offsets, sp):
    """y3 = conv3x3(ReLU(BN(y1)) + ReLU(BN(y2)), W2) + stats(y3)."""
    mask = mask_ref[...]
    f = jnp.maximum(s1_ref[...] * y1_ref[0].astype(jnp.float32) + t1_ref[...], 0.0)
    a = jnp.maximum(s2_ref[...] * y2_ref[0].astype(jnp.float32) + t2_ref[...], 0.0)
    y3 = _conv_mxu((f + a) * mask, w_ref, offsets, sp) * mask
    y3_ref[0] = y3.astype(y3_ref.dtype)
    _write_stats(stats_ref, y3)


# ---------------------------------------------------------------------------
# Host-side helpers.
# ---------------------------------------------------------------------------
def _gauss_kernels(sigma, gbias):
    """Replicates GaussianConv2d2.__set_kernel__: returns (9, 3, 3) attention taps."""
    ar = jnp.arange(KSIZE, dtype=jnp.float32)
    ks = []
    for i in range(KSIZE):
        for j in range(KSIZE):
            kx = jnp.exp(-(ar - i) ** 2 / (2.0 * sigma[i, j] ** 2))
            ky = jnp.exp(-(ar - j) ** 2 / (2.0 * sigma[i, j] ** 2))
            k2 = jnp.outer(kx, ky)
            k2 = k2 / jnp.sum(k2)
            ks.append(k2 - gbias[i, j])
    return jnp.stack(ks, axis=0)


def _pack_weight(w):
    """(Cout, Cin, 3, 3) -> (Cout, 9*Cin) bf16, flat index (3*dh+dw)*Cin + ci.

    Matches the sublane order of the _im2col stack (tap-major, channel-minor)."""
    co, ci = w.shape[0], w.shape[1]
    return jnp.transpose(w, (0, 2, 3, 1)).reshape(co, KSIZE * KSIZE * ci).astype(jnp.bfloat16)


def _bn_fold(stats, gamma, beta, m):
    """Fold global batch mean/var (from per-image partials) into scale/shift."""
    # TODO(synk): BatchNorm2d running_mean/running_var buffer updates (training
    # side-effect) are not emitted; only the forward activations are produced.
    # NOTE: var = E[x^2] - E[x]^2 in f32 is cancellation-prone for very large
    # activation magnitudes / pixel counts; benign at these scales (clamped >= 0).
    ssum = jnp.sum(stats[:, :, 0], axis=0)
    ssq = jnp.sum(stats[:, :, 1], axis=0)
    mean = ssum / m
    var = jnp.maximum(ssq / m - mean * mean, 0.0)   # biased var, as PyTorch normalizes
    scale = gamma.astype(jnp.float32) * lax.rsqrt(var + BN_EPS)
    shift = beta.astype(jnp.float32) - mean * scale
    c = scale.shape[0]
    return scale.reshape(c, 1), shift.reshape(c, 1)


def conv2d_with_gauss3_forward(x, params):
    """Forward of Conv2d_with_Gauss3 (training-mode BN).  NCHW in, NCHW out."""
    w1, gamma1, beta1 = params["conv1"]
    sigma, gbias, wg, gamma_g, beta_g = params["gauss"]
    w2, gamma2, beta2 = params["conv2"]

    n, cin, h, w = x.shape
    c = w1.shape[0]
    hp, wp = h + 2, w + 2
    raster = hp * wp
    sp = ((raster + 127) // 128) * 128            # lane-dense: multiple of 128
    m = n * h * w                                 # number of valid (non-pad) pixels
    offsets = [(dh - 1) * wp + (dw - 1) for dh in range(KSIZE) for dw in range(KSIZE)]
    cin_p = ((cin + 7) // 8) * 8                  # sublane-align conv1 input channels

    # NCHW -> zero-padded flattened raster (N, Cin_p, Sp): pad + reshape, no transpose.
    xp = jnp.pad(x, ((0, 0), (0, cin_p - cin), (1, 1), (1, 1))).reshape(n, cin_p, raster)
    xp = jnp.pad(xp, ((0, 0), (0, 0), (0, sp - raster)))

    # Validity mask over the padded raster (zeros on the ring and the lane tail).
    p = jnp.arange(sp)
    rr, cc = p // wp, p % wp
    mask = ((rr >= 1) & (rr <= h) & (cc >= 1) & (cc <= w)).astype(jnp.float32).reshape(1, sp)

    # Weights packed for the im2col MXU dots (bf16 operands, f32 accumulation).
    w1p = _pack_weight(jnp.pad(w1, ((0, 0), (0, cin_p - cin), (0, 0), (0, 0))))  # (C, 9*Cin_p)
    wgs = _pack_weight(wg[:, :c])                 # (C, 9C)  score half of the concat
    wgf = _pack_weight(wg[:, c:])                 # (C, 9C)  f half of the concat
    w2p = _pack_weight(w2)                        # (C, 9C)
    ksum = jnp.sum(_gauss_kernels(sigma, gbias), axis=0).reshape(-1)  # (9,) f32 -> SMEM

    cp = pltpu.CompilerParams(
        dimension_semantics=("parallel",),        # batch axis -> megacore sharding
        vmem_limit_bytes=32 * 1024 * 1024,
    )
    # TODO(synk): for large H*W (esp. v7x's 64 MiB VMEM / 2 TCs), add a second
    # "parallel" grid axis of overlapping row tiles (halo rows + per-tile mask)
    # instead of whole-image blocks; images here are tiny so one image per step.

    act_dtype = jnp.bfloat16                      # halve cross-call HBM traffic

    def img_spec(ch):
        return pl.BlockSpec((1, ch, sp), lambda i: (i, 0, 0))

    def bcast_spec(shape):
        return pl.BlockSpec(shape, lambda i: (0,) * len(shape))

    smem_spec = pl.BlockSpec(memory_space=pltpu.MemorySpace.SMEM)
    stats_spec = pl.BlockSpec((1, c, 2), lambda i: (i, 0, 0))
    stats_shape = jax.ShapeDtypeStruct((n, c, 2), jnp.float32)
    act_shape = jax.ShapeDtypeStruct((n, c, sp), act_dtype)

    # --- conv1: 3x3 conv (MXU) + per-image BN partial stats --------------------
    y1, st1 = pl.pallas_call(
        functools.partial(_conv_stats_kernel, offsets=offsets, sp=sp),
        grid=(n,),
        in_specs=[img_spec(cin_p), bcast_spec(w1p.shape), bcast_spec((1, sp))],
        out_specs=(img_spec(c), stats_spec),
        out_shape=(act_shape, stats_shape),
        compiler_params=cp,
    )(xp, w1p, mask)
    scale1, shift1 = _bn_fold(st1, gamma1, beta1, m)

    # --- gauss block: fused BN+ReLU(y1) -> depthwise -> conv over implicit concat
    y2, st2 = pl.pallas_call(
        functools.partial(_gauss_fused_kernel, offsets=offsets, sp=sp, c=c),
        grid=(n,),
        in_specs=[img_spec(c), bcast_spec((c, 1)), bcast_spec((c, 1)),
                  smem_spec, bcast_spec(wgs.shape), bcast_spec(wgf.shape),
                  bcast_spec((1, sp))],
        out_specs=(img_spec(c), stats_spec),
        out_shape=(act_shape, stats_shape),
        compiler_params=cp,
    )(y1, scale1, shift1, ksum, wgs, wgf, mask)
    scale2, shift2 = _bn_fold(st2, gamma_g, beta_g, m)

    # --- conv2 over (f + atten); f and atten recomputed from y1/y2 via folded BN
    y3, st3 = pl.pallas_call(
        functools.partial(_sum_conv_stats_kernel, offsets=offsets, sp=sp),
        grid=(n,),
        in_specs=[img_spec(c), bcast_spec((c, 1)), bcast_spec((c, 1)),
                  img_spec(c), bcast_spec((c, 1)), bcast_spec((c, 1)),
                  bcast_spec(w2p.shape), bcast_spec((1, sp))],
        out_specs=(img_spec(c), stats_spec),
        out_shape=(act_shape, stats_shape),
        compiler_params=cp,
    )(y1, scale1, shift1, y2, scale2, shift2, w2p, mask)
    scale3, shift3 = _bn_fold(st3, gamma2, beta2, m)

    # --- final BN + ReLU: plain JAX, fused by XLA with the un-padding trim -----
    y3t = y3[:, :, :raster].reshape(n, c, hp, wp)[:, :, 1:h + 1, 1:w + 1]
    deep = jnp.maximum(scale3.reshape(1, c, 1, 1) * y3t.astype(jnp.float32)
                       + shift3.reshape(1, c, 1, 1), 0.0)
    return deep.astype(x.dtype)


# ---------------------------------------------------------------------------
# Pure-JAX reference mirroring the PyTorch forward literally (for validation).
# ---------------------------------------------------------------------------
def _reference(x, params):
    w1, gamma1, beta1 = params["conv1"]
    sigma, gbias, wg, gamma_g, beta_g = params["gauss"]
    w2, gamma2, beta2 = params["conv2"]
    dn = ("NCHW", "OIHW", "NCHW")

    def conv3(t, wt):
        return lax.conv_general_dilated(t, wt, (1, 1), ((1, 1), (1, 1)),
                                        dimension_numbers=dn)

    def bn_relu(y, gamma, beta):
        mean = jnp.mean(y, axis=(0, 2, 3), keepdims=True)
        var = jnp.mean((y - mean) ** 2, axis=(0, 2, 3), keepdims=True)
        z = gamma[None, :, None, None] * (y - mean) * lax.rsqrt(var + BN_EPS) \
            + beta[None, :, None, None]
        return jnp.maximum(z, 0.0)

    n, _, h, w = x.shape
    f = bn_relu(conv3(x, w1), gamma1, beta1)                       # conv1 (bias cancels in BN)
    c = f.shape[1]
    gk = _gauss_kernels(sigma, gbias)                              # (9, 3, 3)
    score = conv3(f.reshape(n * c, 1, h, w), gk[:, None, :, :])    # atten: Conv2d(1, 9, 3)
    score = jnp.sum(score, axis=1).reshape(n, c, h, w)             # sum over 9 channels
    atten = bn_relu(conv3(jnp.concatenate([score, f], axis=1), wg), gamma_g, beta_g)
    deep = bn_relu(conv3(f + atten, w2), gamma2, beta2)            # conv2; downsampler=None
    return deep


if __name__ == "__main__":
    key = jax.random.PRNGKey(0)
    keys = jax.random.split(key, 12)
    N, CIN, C, H, W = 2, 4, 8, 16, 16

    x = jax.random.normal(keys[0], (N, CIN, H, W), dtype=jnp.float32)
    W1 = 0.1 * jax.random.normal(keys[1], (C, CIN, 3, 3), dtype=jnp.float32)
    gamma1 = 1.0 + 0.1 * jax.random.normal(keys[2], (C,), dtype=jnp.float32)
    beta1 = 0.1 * jax.random.normal(keys[3], (C,), dtype=jnp.float32)
    sigma = 0.6 * (1.0 + 0.1 * jax.random.normal(keys[4], (3, 3), dtype=jnp.float32))
    gbias = jax.random.normal(keys[5], (3, 3), dtype=jnp.float32) - 0.1
    Wg = 0.1 * jax.random.normal(keys[6], (C, 2 * C, 3, 3), dtype=jnp.float32)
    gamma_g = 1.0 + 0.1 * jax.random.normal(keys[7], (C,), dtype=jnp.float32)
    beta_g = 0.1 * jax.random.normal(keys[8], (C,), dtype=jnp.float32)
    W2 = 0.1 * jax.random.normal(keys[9], (C, C, 3, 3), dtype=jnp.float32)
    gamma2 = 1.0 + 0.1 * jax.random.normal(keys[10], (C,), dtype=jnp.float32)
    beta2 = 0.1 * jax.random.normal(keys[11], (C,), dtype=jnp.float32)

    params = dict(conv1=(W1, gamma1, beta1),
                  gauss=(sigma, gbias, Wg, gamma_g, beta_g),
                  conv2=(W2, gamma2, beta2))

    fwd = jax.jit(conv2d_with_gauss3_forward)
    deep = jax.block_until_ready(fwd(x, params))

    ref = _reference(x, params)
    assert deep.shape == (N, C, H, W)
    # bf16 MXU operands + bf16 activation storage -> looser tolerance than pure f32.
    assert jnp.allclose(deep, ref, atol=5e-2, rtol=5e-2), \
        float(jnp.max(jnp.abs(deep - ref)))

    print("KERNEL_OK")
</pallas_src>

<mosaic_0001>
module attributes {stable_mosaic.version = 11 : i64} {
  func.func @_conv_stats_kernel(%arg0: i32, %arg1: memref<1x8x384xf32, #tpu.memory_space<vmem>>, %arg2: memref<8x72xbf16, #tpu.memory_space<vmem>>, %arg3: memref<1x384xf32, #tpu.memory_space<vmem>>, %arg4: memref<1x8x384xbf16, #tpu.memory_space<vmem>>, %arg5: memref<1x8x2xf32, #tpu.memory_space<vmem>>) attributes {dimension_semantics = [#tpu.dimension_semantics<parallel>], iteration_bounds = array<i64: 2>, scalar_prefetch = 0 : i64, scratch_operands = 0 : i64, tpu.core_type = #tpu.core_type<tc>, window_params = [{transform_indices = @transform_0, window_bounds = array<i64: 1, 8, 384>}, {pipeline_mode = #tpu.pipeline_mode<synchronous>, transform_indices = @transform_1, window_bounds = array<i64: 8, 72>}, {pipeline_mode = #tpu.pipeline_mode<synchronous>, transform_indices = @transform_2, window_bounds = array<i64: 1, 384>}, {transform_indices = @transform_3, window_bounds = array<i64: 1, 8, 384>}, {transform_indices = @transform_4, window_bounds = array<i64: 1, 8, 2>}]} {
    %c0 = arith.constant 0 : index
    %c0_0 = arith.constant 0 : index
    %c0_1 = arith.constant 0 : index
    %0 = vector.load %arg1[%c0, %c0_0, %c0_1] : memref<1x8x384xf32, #tpu.memory_space<vmem>>, vector<1x8x384xf32>
    %1 = vector.shape_cast %0 : vector<1x8x384xf32> to vector<8x384xf32>
    %c19_i32 = arith.constant 19 : i32
    %2 = tpu.dynamic_rotate %1 by %c19_i32 dim 1 : vector<8x384xf32>, i32 -> vector<8x384xf32>
    %c18_i32 = arith.constant 18 : i32
    %3 = tpu.dynamic_rotate %1 by %c18_i32 dim 1 : vector<8x384xf32>, i32 -> vector<8x384xf32>
    %c17_i32 = arith.constant 17 : i32
    %4 = tpu.dynamic_rotate %1 by %c17_i32 dim 1 : vector<8x384xf32>, i32 -> vector<8x384xf32>
    %c1_i32 = arith.constant 1 : i32
    %5 = tpu.dynamic_rotate %1 by %c1_i32 dim 1 : vector<8x384xf32>, i32 -> vector<8x384xf32>
    %c383_i32 = arith.constant 383 : i32
    %6 = tpu.dynamic_rotate %1 by %c383_i32 dim 1 : vector<8x384xf32>, i32 -> vector<8x384xf32>
    %c367_i32 = arith.constant 367 : i32
    %7 = tpu.dynamic_rotate %1 by %c367_i32 dim 1 : vector<8x384xf32>, i32 -> vector<8x384xf32>
    %c366_i32 = arith.constant 366 : i32
    %8 = tpu.dynamic_rotate %1 by %c366_i32 dim 1 : vector<8x384xf32>, i32 -> vector<8x384xf32>
    %c365_i32 = arith.constant 365 : i32
    %9 = tpu.dynamic_rotate %1 by %c365_i32 dim 1 : vector<8x384xf32>, i32 -> vector<8x384xf32>
    %10 = tpu.concatenate %2, %3, %4, %5, %1, %6, %7, %8, %9 in 0 : vector<8x384xf32>, vector<8x384xf32>, vector<8x384xf32>, vector<8x384xf32>, vector<8x384xf32>, vector<8x384xf32>, vector<8x384xf32>, vector<8x384xf32>, vector<8x384xf32> -> vector<72x384xf32>
    %11 = arith.truncf %10 : vector<72x384xf32> to vector<72x384xbf16>
    %c0_2 = arith.constant 0 : index
    %c0_3 = arith.constant 0 : index
    %12 = vector.load %arg2[%c0_2, %c0_3] : memref<8x72xbf16, #tpu.memory_space<vmem>>, vector<8x72xbf16>
    %cst = arith.constant dense<0.000000e+00> : vector<8x384xf32>
    %13 = tpu.matmul %12, %11, %cst {dimension_numbers = #tpu.dot_dimension_numbers<[1], [0], [0], [1], [0, 0, 1, 1], [], []>} : vector<8x72xbf16>, vector<72x384xbf16>, vector<8x384xf32> -> vector<8x384xf32>
    %c0_4 = arith.constant 0 : index
    %c0_5 = arith.constant 0 : index
    %14 = vector.load %arg3[%c0_4, %c0_5] : memref<1x384xf32, #tpu.memory_space<vmem>>, vector<1x384xf32>
    %15 = vector.broadcast %14 : vector<1x384xf32> to vector<8x384xf32>
    %16 = arith.mulf %13, %15 : vector<8x384xf32>
    %17 = arith.truncf %16 : vector<8x384xf32> to vector<8x384xbf16>
    %c0_6 = arith.constant 0 : index
    %c0_7 = arith.constant 0 : index
    %c0_8 = arith.constant 0 : index
    %18 = vector.load %arg4[%c0_6, %c0_7, %c0_8] : memref<1x8x384xbf16, #tpu.memory_space<vmem>>, vector<1x8x384xbf16>
    %19 = vector.shape_cast %18 : vector<1x8x384xbf16> to vector<8x384xbf16>
    %20 = vector.shape_cast %17 : vector<8x384xbf16> to vector<1x8x384xbf16>
    tpu.vector_store %arg4[%c0_6, %c0_7, %c0_8], %20 {strides = array<i32>} : memref<1x8x384xbf16, #tpu.memory_space<vmem>>, vector<1x8x384xbf16>,
    %cst_9 = arith.constant dense<0.000000e+00> : vector<8xf32>
    %21 = vector.multi_reduction <add>, %16, %cst_9 [1] : vector<8x384xf32> to vector<8xf32>
    %22 = vector.shape_cast %21 : vector<8xf32> to vector<8x1xf32>
    %23 = arith.mulf %16, %16 : vector<8x384xf32>
    %cst_10 = arith.constant dense<0.000000e+00> : vector<8xf32>
    %24 = vector.multi_reduction <add>, %23, %cst_10 [1] : vector<8x384xf32> to vector<8xf32>
    %25 = vector.shape_cast %24 : vector<8xf32> to vector<8x1xf32>
    %26 = tpu.concatenate %22, %25 in 1 : vector<8x1xf32>, vector<8x1xf32> -> vector<8x2xf32>
    %c0_11 = arith.constant 0 : index
    %c0_12 = arith.constant 0 : index
    %c0_13 = arith.constant 0 : index
    %27 = vector.load %arg5[%c0_11, %c0_12, %c0_13] : memref<1x8x2xf32, #tpu.memory_space<vmem>>, vector<1x8x2xf32>
    %28 = vector.shape_cast %27 : vector<1x8x2xf32> to vector<8x2xf32>
    %29 = vector.shape_cast %26 : vector<8x2xf32> to vector<1x8x2xf32>
    tpu.vector_store %arg5[%c0_11, %c0_12, %c0_13], %29 {strides = array<i32>} : memref<1x8x2xf32, #tpu.memory_space<vmem>>, vector<1x8x2xf32>,
    return
  }
  func.func @transform_0(%arg0: i32) -> (i32, i32, i32) {
    %c0_i32 = arith.constant 0 : i32
    %c0_i32_0 = arith.constant 0 : i32
    %c0_i32_1 = arith.constant 0 : i32
    return %arg0, %c0_i32, %c0_i32_0 : i32, i32, i32
  }
  func.func @transform_1(%arg0: i32) -> (i32, i32) {
    %c0_i32 = arith.constant 0 : i32
    %c0_i32_0 = arith.constant 0 : i32
    %c0_i32_1 = arith.constant 0 : i32
    return %c0_i32, %c0_i32_0 : i32, i32
  }
  func.func @transform_2(%arg0: i32) -> (i32, i32) {
    %c0_i32 = arith.constant 0 : i32
    %c0_i32_0 = arith.constant 0 : i32
    %c0_i32_1 = arith.constant 0 : i32
    return %c0_i32, %c0_i32_0 : i32, i32
  }
  func.func @transform_3(%arg0: i32) -> (i32, i32, i32) {
    %c0_i32 = arith.constant 0 : i32
    %c0_i32_0 = arith.constant 0 : i32
    %c0_i32_1 = arith.constant 0 : i32
    return %arg0, %c0_i32, %c0_i32_0 : i32, i32, i32
  }
  func.func @transform_4(%arg0: i32) -> (i32, i32, i32) {
    %c0_i32 = arith.constant 0 : i32
    %c0_i32_0 = arith.constant 0 : i32
    %c0_i32_1 = arith.constant 0 : i32
    return %arg0, %c0_i32, %c0_i32_0 : i32, i32, i32
  }
}

module attributes {stable_mosaic.version = 11 : i64} {
  func.func @_sum_conv_stats_kernel(%arg0: i32, %arg1: memref<1x8x384xbf16, #tpu.memory_space<vmem>>, %arg2: memref<8x1xf32, #tpu.memory_space<vmem>>, %arg3: memref<8x1xf32, #tpu.memory_space<vmem>>, %arg4: memref<1x8x384xbf16, #tpu.memory_space<vmem>>, %arg5: memref<8x1xf32, #tpu.memory_space<vmem>>, %arg6: memref<8x1xf32, #tpu.memory_space<vmem>>, %arg7: memref<8x72xbf16, #tpu.memory_space<vmem>>, %arg8: memref<1x384xf32, #tpu.memory_space<vmem>>, %arg9: memref<1x8x384xbf16, #tpu.memory_space<vmem>>, %arg10: memref<1x8x2xf32, #tpu.memory_space<vmem>>) attributes {dimension_semantics = [#tpu.dimension_semantics<parallel>], iteration_bounds = array<i64: 2>, scalar_prefetch = 0 : i64, scratch_operands = 0 : i64, tpu.core_type = #tpu.core_type<tc>, window_params = [{transform_indices = @transform_0, window_bounds = array<i64: 1, 8, 384>}, {pipeline_mode = #tpu.pipeline_mode<synchronous>, transform_indices = @transform_1, window_bounds = array<i64: 8, 1>}, {pipeline_mode = #tpu.pipeline_mode<synchronous>, transform_indices = @transform_2, window_bounds = array<i64: 8, 1>}, {transform_indices = @transform_3, window_bounds = array<i64: 1, 8, 384>}, {pipeline_mode = #tpu.pipeline_mode<synchronous>, transform_indices = @transform_4, window_bounds = array<i64: 8, 1>}, {pipeline_mode = #tpu.pipeline_mode<synchronous>, transform_indices = @transform_5, window_bounds = array<i64: 8, 1>}, {pipeline_mode = #tpu.pipeline_mode<synchronous>, transform_indices = @transform_6, window_bounds = array<i64: 8, 72>}, {pipeline_mode = #tpu.pipeline_mode<synchronous>, transform_indices = @transform_7, window_bounds = array<i64: 1, 384>}, {transform_indices = @transform_8, window_bounds = array<i64: 1, 8, 384>}, {transform_indices = @transform_9, window_bounds = array<i64: 1, 8, 2>}]} {
    %c0 = arith.constant 0 : index
    %c0_0 = arith.constant 0 : index
    %0 = vector.load %arg8[%c0, %c0_0] : memref<1x384xf32, #tpu.memory_space<vmem>>, vector<1x384xf32>
    %c0_1 = arith.constant 0 : index
    %c0_2 = arith.constant 0 : index
    %1 = vector.load %arg2[%c0_1, %c0_2] : memref<8x1xf32, #tpu.memory_space<vmem>>, vector<8x1xf32>
    %c0_3 = arith.constant 0 : index
    %c0_4 = arith.constant 0 : index
    %c0_5 = arith.constant 0 : index
    %2 = vector.load %arg1[%c0_3, %c0_4, %c0_5] : memref<1x8x384xbf16, #tpu.memory_space<vmem>>, vector<1x8x384xbf16>
    %3 = vector.shape_cast %2 : vector<1x8x384xbf16> to vector<8x384xbf16>
    %4 = arith.extf %3 : vector<8x384xbf16> to vector<8x384xf32>
    %5 = vector.broadcast %1 : vector<8x1xf32> to vector<8x384xf32>
    %6 = arith.mulf %5, %4 : vector<8x384xf32>
    %c0_6 = arith.constant 0 : index
    %c0_7 = arith.constant 0 : index
    %7 = vector.load %arg3[%c0_6, %c0_7] : memref<8x1xf32, #tpu.memory_space<vmem>>, vector<8x1xf32>
    %8 = vector.broadcast %7 : vector<8x1xf32> to vector<8x384xf32>
    %9 = arith.addf %6, %8 : vector<8x384xf32>
    %cst = arith.constant 0.000000e+00 : f32
    %10 = vector.broadcast %cst : f32 to vector<8x384xf32>
    %11 = arith.maximumf %9, %10 : vector<8x384xf32>
    %c0_8 = arith.constant 0 : index
    %c0_9 = arith.constant 0 : index
    %12 = vector.load %arg5[%c0_8, %c0_9] : memref<8x1xf32, #tpu.memory_space<vmem>>, vector<8x1xf32>
    %c0_10 = arith.constant 0 : index
    %c0_11 = arith.constant 0 : index
    %c0_12 = arith.constant 0 : index
    %13 = vector.load %arg4[%c0_10, %c0_11, %c0_12] : memref<1x8x384xbf16, #tpu.memory_space<vmem>>, vector<1x8x384xbf16>
    %14 = vector.shape_cast %13 : vector<1x8x384xbf16> to vector<8x384xbf16>
    %15 = arith.extf %14 : vector<8x384xbf16> to vector<8x384xf32>
    %16 = vector.broadcast %12 : vector<8x1xf32> to vector<8x384xf32>
    %17 = arith.mulf %16, %15 : vector<8x384xf32>
    %c0_13 = arith.constant 0 : index
    %c0_14 = arith.constant 0 : index
    %18 = vector.load %arg6[%c0_13, %c0_14] : memref<8x1xf32, #tpu.memory_space<vmem>>, vector<8x1xf32>
    %19 = vector.broadcast %18 : vector<8x1xf32> to vector<8x384xf32>
    %20 = arith.addf %17, %19 : vector<8x384xf32>
    %cst_15 = arith.constant 0.000000e+00 : f32
    %21 = vector.broadcast %cst_15 : f32 to vector<8x384xf32>
    %22 = arith.maximumf %20, %21 : vector<8x384xf32>
    %23 = arith.addf %11, %22 : vector<8x384xf32>
    %24 = vector.broadcast %0 : vector<1x384xf32> to vector<8x384xf32>
    %25 = arith.mulf %23, %24 : vector<8x384xf32>
    %c19_i32 = arith.constant 19 : i32
    %26 = tpu.dynamic_rotate %25 by %c19_i32 dim 1 : vector<8x384xf32>, i32 -> vector<8x384xf32>
    %c18_i32 = arith.constant 18 : i32
    %27 = tpu.dynamic_rotate %25 by %c18_i32 dim 1 : vector<8x384xf32>, i32 -> vector<8x384xf32>
    %c17_i32 = arith.constant 17 : i32
    %28 = tpu.dynamic_rotate %25 by %c17_i32 dim 1 : vector<8x384xf32>, i32 -> vector<8x384xf32>
    %c1_i32 = arith.constant 1 : i32
    %29 = tpu.dynamic_rotate %25 by %c1_i32 dim 1 : vector<8x384xf32>, i32 -> vector<8x384xf32>
    %c383_i32 = arith.constant 383 : i32
    %30 = tpu.dynamic_rotate %25 by %c383_i32 dim 1 : vector<8x384xf32>, i32 -> vector<8x384xf32>
    %c367_i32 = arith.constant 367 : i32
    %31 = tpu.dynamic_rotate %25 by %c367_i32 dim 1 : vector<8x384xf32>, i32 -> vector<8x384xf32>
    %c366_i32 = arith.constant 366 : i32
    %32 = tpu.dynamic_rotate %25 by %c366_i32 dim 1 : vector<8x384xf32>, i32 -> vector<8x384xf32>
    %c365_i32 = arith.constant 365 : i32
    %33 = tpu.dynamic_rotate %25 by %c365_i32 dim 1 : vector<8x384xf32>, i32 -> vector<8x384xf32>
    %34 = tpu.concatenate %26, %27, %28, %29, %25, %30, %31, %32, %33 in 0 : vector<8x384xf32>, vector<8x384xf32>, vector<8x384xf32>, vector<8x384xf32>, vector<8x384xf32>, vector<8x384xf32>, vector<8x384xf32>, vector<8x384xf32>, vector<8x384xf32> -> vector<72x384xf32>
    %35 = arith.truncf %34 : vector<72x384xf32> to vector<72x384xbf16>
    %c0_16 = arith.constant 0 : index
    %c0_17 = arith.constant 0 : index
    %36 = vector.load %arg7[%c0_16, %c0_17] : memref<8x72xbf16, #tpu.memory_space<vmem>>, vector<8x72xbf16>
    %cst_18 = arith.constant dense<0.000000e+00> : vector<8x384xf32>
    %37 = tpu.matmul %36, %35, %cst_18 {dimension_numbers = #tpu.dot_dimension_numbers<[1], [0], [0], [1], [0, 0, 1, 1], [], []>} : vector<8x72xbf16>, vector<72x384xbf16>, vector<8x384xf32> -> vector<8x384xf32>
    %38 = vector.broadcast %0 : vector<1x384xf32> to vector<8x384xf32>
    %39 = arith.mulf %37, %38 : vector<8x384xf32>
    %40 = arith.truncf %39 : vector<8x384xf32> to vector<8x384xbf16>
    %c0_19 = arith.constant 0 : index
    %c0_20 = arith.constant 0 : index
    %c0_21 = arith.constant 0 : index
    %41 = vector.load %arg9[%c0_19, %c0_20, %c0_21] : memref<1x8x384xbf16, #tpu.memory_space<vmem>>, vector<1x8x384xbf16>
    %42 = vector.shape_cast %41 : vector<1x8x384xbf16> to vector<8x384xbf16>
    %43 = vector.shape_cast %40 : vector<8x384xbf16> to vector<1x8x384xbf16>
    tpu.vector_store %arg9[%c0_19, %c0_20, %c0_21], %43 {strides = array<i32>} : memref<1x8x384xbf16, #tpu.memory_space<vmem>>, vector<1x8x384xbf16>,
    %cst_22 = arith.constant dense<0.000000e+00> : vector<8xf32>
    %44 = vector.multi_reduction <add>, %39, %cst_22 [1] : vector<8x384xf32> to vector<8xf32>
    %45 = vector.shape_cast %44 : vector<8xf32> to vector<8x1xf32>
    %46 = arith.mulf %39, %39 : vector<8x384xf32>
    %cst_23 = arith.constant dense<0.000000e+00> : vector<8xf32>
    %47 = vector.multi_reduction <add>, %46, %cst_23 [1] : vector<8x384xf32> to vector<8xf32>
    %48 = vector.shape_cast %47 : vector<8xf32> to vector<8x1xf32>
    %49 = tpu.concatenate %45, %48 in 1 : vector<8x1xf32>, vector<8x1xf32> -> vector<8x2xf32>
    %c0_24 = arith.constant 0 : index
    %c0_25 = arith.constant 0 : index
    %c0_26 = arith.constant 0 : index
    %50 = vector.load %arg10[%c0_24, %c0_25, %c0_26] : memref<1x8x2xf32, #tpu.memory_space<vmem>>, vector<1x8x2xf32>
    %51 = vector.shape_cast %50 : vector<1x8x2xf32> to vector<8x2xf32>
    %52 = vector.shape_cast %49 : vector<8x2xf32> to vector<1x8x2xf32>
    tpu.vector_store %arg10[%c0_24, %c0_25, %c0_26], %52 {strides = array<i32>} : memref<1x8x2xf32, #tpu.memory_space<vmem>>, vector<1x8x2xf32>,
    return
  }
  func.func @transform_0(%arg0: i32) -> (i32, i32, i32) {
    %c0_i32 = arith.constant 0 : i32
    %c0_i32_0 = arith.constant 0 : i32
    %c0_i32_1 = arith.constant 0 : i32
    return %arg0, %c0_i32, %c0_i32_0 : i32, i32, i32
  }
  func.func @transform_1(%arg0: i32) -> (i32, i32) {
    %c0_i32 = arith.constant 0 : i32
    %c0_i32_0 = arith.constant 0 : i32
    %c0_i32_1 = arith.constant 0 : i32
    return %c0_i32, %c0_i32_0 : i32, i32
  }
  func.func @transform_2(%arg0: i32) -> (i32, i32) {
    %c0_i32 = arith.constant 0 : i32
    %c0_i32_0 = arith.constant 0 : i32
    %c0_i32_1 = arith.constant 0 : i32
    return %c0_i32, %c0_i32_0 : i32, i32
  }
  func.func @transform_3(%arg0: i32) -> (i32, i32, i32) {
    %c0_i32 = arith.constant 0 : i32
    %c0_i32_0 = arith.constant 0 : i32
    %c0_i32_1 = arith.constant 0 : i32
    return %arg0, %c0_i32, %c0_i32_0 : i32, i32, i32
  }
  func.func @transform_4(%arg0: i32) -> (i32, i32) {
    %c0_i32 = arith.constant 0 : i32
    %c0_i32_0 = arith.constant 0 : i32
    %c0_i32_1 = arith.constant 0 : i32
    return %c0_i32, %c0_i32_0 : i32, i32
  }
  func.func @transform_5(%arg0: i32) -> (i32, i32) {
    %c0_i32 = arith.constant 0 : i32
    %c0_i32_0 = arith.constant 0 : i32
    %c0_i32_1 = arith.constant 0 : i32
    return %c0_i32, %c0_i32_0 : i32, i32
  }
  func.func @transform_6(%arg0: i32) -> (i32, i32) {
    %c0_i32 = arith.constant 0 : i32
    %c0_i32_0 = arith.constant 0 : i32
    %c0_i32_1 = arith.constant 0 : i32
    return %c0_i32, %c0_i32_0 : i32, i32
  }
  func.func @transform_7(%arg0: i32) -> (i32, i32) {
    %c0_i32 = arith.constant 0 : i32
    %c0_i32_0 = arith.constant 0 : i32
    %c0_i32_1 = arith.constant 0 : i32
    return %c0_i32, %c0_i32_0 : i32, i32
  }
  func.func @transform_8(%arg0: i32) -> (i32, i32, i32) {
    %c0_i32 = arith.constant 0 : i32
    %c0_i32_0 = arith.constant 0 : i32
    %c0_i32_1 = arith.constant 0 : i32
    return %arg0, %c0_i32, %c0_i32_0 : i32, i32, i32
  }
  func.func @transform_9(%arg0: i32) -> (i32, i32, i32) {
    %c0_i32 = arith.constant 0 : i32
    %c0_i32_0 = arith.constant 0 : i32
    %c0_i32_1 = arith.constant 0 : i32
    return %arg0, %c0_i32, %c0_i32_0 : i32, i32, i32
  }
}

module attributes {stable_mosaic.version = 11 : i64} {
  func.func @_gauss_fused_kernel(%arg0: i32, %arg1: memref<1x8x384xbf16, #tpu.memory_space<vmem>>, %arg2: memref<8x1xf32, #tpu.memory_space<vmem>>, %arg3: memref<8x1xf32, #tpu.memory_space<vmem>>, %arg4: memref<9xf32, #tpu.memory_space<smem>>, %arg5: memref<8x72xbf16, #tpu.memory_space<vmem>>, %arg6: memref<8x72xbf16, #tpu.memory_space<vmem>>, %arg7: memref<1x384xf32, #tpu.memory_space<vmem>>, %arg8: memref<1x8x384xbf16, #tpu.memory_space<vmem>>, %arg9: memref<1x8x2xf32, #tpu.memory_space<vmem>>) attributes {dimension_semantics = [#tpu.dimension_semantics<parallel>], iteration_bounds = array<i64: 2>, scalar_prefetch = 0 : i64, scratch_operands = 0 : i64, tpu.core_type = #tpu.core_type<tc>, window_params = [{transform_indices = @transform_0, window_bounds = array<i64: 1, 8, 384>}, {pipeline_mode = #tpu.pipeline_mode<synchronous>, transform_indices = @transform_1, window_bounds = array<i64: 8, 1>}, {pipeline_mode = #tpu.pipeline_mode<synchronous>, transform_indices = @transform_2, window_bounds = array<i64: 8, 1>}, {transform_indices = @transform_3, window_bounds = array<i64: 9>}, {pipeline_mode = #tpu.pipeline_mode<synchronous>, transform_indices = @transform_4, window_bounds = array<i64: 8, 72>}, {pipeline_mode = #tpu.pipeline_mode<synchronous>, transform_indices = @transform_5, window_bounds = array<i64: 8, 72>}, {pipeline_mode = #tpu.pipeline_mode<synchronous>, transform_indices = @transform_6, window_bounds = array<i64: 1, 384>}, {transform_indices = @transform_7, window_bounds = array<i64: 1, 8, 384>}, {transform_indices = @transform_8, window_bounds = array<i64: 1, 8, 2>}]} {
    %c0 = arith.constant 0 : index
    %c0_0 = arith.constant 0 : index
    %0 = vector.load %arg7[%c0, %c0_0] : memref<1x384xf32, #tpu.memory_space<vmem>>, vector<1x384xf32>
    %c0_1 = arith.constant 0 : index
    %c0_2 = arith.constant 0 : index
    %1 = vector.load %arg2[%c0_1, %c0_2] : memref<8x1xf32, #tpu.memory_space<vmem>>, vector<8x1xf32>
    %c0_3 = arith.constant 0 : index
    %c0_4 = arith.constant 0 : index
    %c0_5 = arith.constant 0 : index
    %2 = vector.load %arg1[%c0_3, %c0_4, %c0_5] : memref<1x8x384xbf16, #tpu.memory_space<vmem>>, vector<1x8x384xbf16>
    %3 = vector.shape_cast %2 : vector<1x8x384xbf16> to vector<8x384xbf16>
    %4 = arith.extf %3 : vector<8x384xbf16> to vector<8x384xf32>
    %5 = vector.broadcast %1 : vector<8x1xf32> to vector<8x384xf32>
    %6 = arith.mulf %5, %4 : vector<8x384xf32>
    %c0_6 = arith.constant 0 : index
    %c0_7 = arith.constant 0 : index
    %7 = vector.load %arg3[%c0_6, %c0_7] : memref<8x1xf32, #tpu.memory_space<vmem>>, vector<8x1xf32>
    %8 = vector.broadcast %7 : vector<8x1xf32> to vector<8x384xf32>
    %9 = arith.addf %6, %8 : vector<8x384xf32>
    %cst = arith.constant 0.000000e+00 : f32
    %10 = vector.broadcast %cst : f32 to vector<8x384xf32>
    %11 = arith.maximumf %9, %10 : vector<8x384xf32>
    %12 = vector.broadcast %0 : vector<1x384xf32> to vector<8x384xf32>
    %13 = arith.mulf %11, %12 : vector<8x384xf32>
    %c19_i32 = arith.constant 19 : i32
    %14 = tpu.dynamic_rotate %13 by %c19_i32 dim 1 : vector<8x384xf32>, i32 -> vector<8x384xf32>
    %c18_i32 = arith.constant 18 : i32
    %15 = tpu.dynamic_rotate %13 by %c18_i32 dim 1 : vector<8x384xf32>, i32 -> vector<8x384xf32>
    %c17_i32 = arith.constant 17 : i32
    %16 = tpu.dynamic_rotate %13 by %c17_i32 dim 1 : vector<8x384xf32>, i32 -> vector<8x384xf32>
    %c1_i32 = arith.constant 1 : i32
    %17 = tpu.dynamic_rotate %13 by %c1_i32 dim 1 : vector<8x384xf32>, i32 -> vector<8x384xf32>
    %c383_i32 = arith.constant 383 : i32
    %18 = tpu.dynamic_rotate %13 by %c383_i32 dim 1 : vector<8x384xf32>, i32 -> vector<8x384xf32>
    %c367_i32 = arith.constant 367 : i32
    %19 = tpu.dynamic_rotate %13 by %c367_i32 dim 1 : vector<8x384xf32>, i32 -> vector<8x384xf32>
    %c366_i32 = arith.constant 366 : i32
    %20 = tpu.dynamic_rotate %13 by %c366_i32 dim 1 : vector<8x384xf32>, i32 -> vector<8x384xf32>
    %c365_i32 = arith.constant 365 : i32
    %21 = tpu.dynamic_rotate %13 by %c365_i32 dim 1 : vector<8x384xf32>, i32 -> vector<8x384xf32>
    %22 = tpu.concatenate %14, %15, %16, %17, %13, %18, %19, %20, %21 in 0 : vector<8x384xf32>, vector<8x384xf32>, vector<8x384xf32>, vector<8x384xf32>, vector<8x384xf32>, vector<8x384xf32>, vector<8x384xf32>, vector<8x384xf32>, vector<8x384xf32> -> vector<72x384xf32>
    %cst_8 = arith.constant 0.000000e+00 : f32
    %23 = vector.broadcast %cst_8 : f32 to vector<8x384xf32>
    %c0_9 = arith.constant 0 : index
    %24 = memref.load %arg4[%c0_9] : memref<9xf32, #tpu.memory_space<smem>>
    %25 = vector.extract_strided_slice %22 {offsets = [0, 0], sizes = [8, 384], strides = [1, 1]} : vector<72x384xf32> to vector<8x384xf32>
    %26 = vector.broadcast %24 : f32 to vector<8x384xf32>
    %27 = arith.mulf %26, %25 : vector<8x384xf32>
    %28 = arith.addf %23, %27 : vector<8x384xf32>
    %c1 = arith.constant 1 : index
    %29 = memref.load %arg4[%c1] : memref<9xf32, #tpu.memory_space<smem>>
    %30 = vector.extract_strided_slice %22 {offsets = [8, 0], sizes = [8, 384], strides = [1, 1]} : vector<72x384xf32> to vector<8x384xf32>
    %31 = vector.broadcast %29 : f32 to vector<8x384xf32>
    %32 = arith.mulf %31, %30 : vector<8x384xf32>
    %33 = arith.addf %28, %32 : vector<8x384xf32>
    %c2 = arith.constant 2 : index
    %34 = memref.load %arg4[%c2] : memref<9xf32, #tpu.memory_space<smem>>
    %35 = vector.extract_strided_slice %22 {offsets = [16, 0], sizes = [8, 384], strides = [1, 1]} : vector<72x384xf32> to vector<8x384xf32>
    %36 = vector.broadcast %34 : f32 to vector<8x384xf32>
    %37 = arith.mulf %36, %35 : vector<8x384xf32>
    %38 = arith.addf %33, %37 : vector<8x384xf32>
    %c3 = arith.constant 3 : index
    %39 = memref.load %arg4[%c3] : memref<9xf32, #tpu.memory_space<smem>>
    %40 = vector.extract_strided_slice %22 {offsets = [24, 0], sizes = [8, 384], strides = [1, 1]} : vector<72x384xf32> to vector<8x384xf32>
    %41 = vector.broadcast %39 : f32 to vector<8x384xf32>
    %42 = arith.mulf %41, %40 : vector<8x384xf32>
    %43 = arith.addf %38, %42 : vector<8x384xf32>
    %c4 = arith.constant 4 : index
    %44 = memref.load %arg4[%c4] : memref<9xf32, #tpu.memory_space<smem>>
    %45 = vector.extract_strided_slice %22 {offsets = [32, 0], sizes = [8, 384], strides = [1, 1]} : vector<72x384xf32> to vector<8x384xf32>
    %46 = vector.broadcast %44 : f32 to vector<8x384xf32>
    %47 = arith.mulf %46, %45 : vector<8x384xf32>
    %48 = arith.addf %43, %47 : vector<8x384xf32>
    %c5 = arith.constant 5 : index
    %49 = memref.load %arg4[%c5] : memref<9xf32, #tpu.memory_space<smem>>
    %50 = vector.extract_strided_slice %22 {offsets = [40, 0], sizes = [8, 384], strides = [1, 1]} : vector<72x384xf32> to vector<8x384xf32>
    %51 = vector.broadcast %49 : f32 to vector<8x384xf32>
    %52 = arith.mulf %51, %50 : vector<8x384xf32>
    %53 = arith.addf %48, %52 : vector<8x384xf32>
    %c6 = arith.constant 6 : index
    %54 = memref.load %arg4[%c6] : memref<9xf32, #tpu.memory_space<smem>>
    %55 = vector.extract_strided_slice %22 {offsets = [48, 0], sizes = [8, 384], strides = [1, 1]} : vector<72x384xf32> to vector<8x384xf32>
    %56 = vector.broadcast %54 : f32 to vector<8x384xf32>
    %57 = arith.mulf %56, %55 : vector<8x384xf32>
    %58 = arith.addf %53, %57 : vector<8x384xf32>
    %c7 = arith.constant 7 : index
    %59 = memref.load %arg4[%c7] : memref<9xf32, #tpu.memory_space<smem>>
    %60 = vector.extract_strided_slice %22 {offsets = [56, 0], sizes = [8, 384], strides = [1, 1]} : vector<72x384xf32> to vector<8x384xf32>
    %61 = vector.broadcast %59 : f32 to vector<8x384xf32>
    %62 = arith.mulf %61, %60 : vector<8x384xf32>
    %63 = arith.addf %58, %62 : vector<8x384xf32>
    %c8 = arith.constant 8 : index
    %64 = memref.load %arg4[%c8] : memref<9xf32, #tpu.memory_space<smem>>
    %65 = vector.extract_strided_slice %22 {offsets = [64, 0], sizes = [8, 384], strides = [1, 1]} : vector<72x384xf32> to vector<8x384xf32>
    %66 = vector.broadcast %64 : f32 to vector<8x384xf32>
    %67 = arith.mulf %66, %65 : vector<8x384xf32>
    %68 = arith.addf %63, %67 : vector<8x384xf32>
    %69 = vector.broadcast %0 : vector<1x384xf32> to vector<8x384xf32>
    %70 = arith.mulf %68, %69 : vector<8x384xf32>
    %c19_i32_10 = arith.constant 19 : i32
    %71 = tpu.dynamic_rotate %70 by %c19_i32_10 dim 1 : vector<8x384xf32>, i32 -> vector<8x384xf32>
    %c18_i32_11 = arith.constant 18 : i32
    %72 = tpu.dynamic_rotate %70 by %c18_i32_11 dim 1 : vector<8x384xf32>, i32 -> vector<8x384xf32>
    %c17_i32_12 = arith.constant 17 : i32
    %73 = tpu.dynamic_rotate %70 by %c17_i32_12 dim 1 : vector<8x384xf32>, i32 -> vector<8x384xf32>
    %c1_i32_13 = arith.constant 1 : i32
    %74 = tpu.dynamic_rotate %70 by %c1_i32_13 dim 1 : vector<8x384xf32>, i32 -> vector<8x384xf32>
    %c383_i32_14 = arith.constant 383 : i32
    %75 = tpu.dynamic_rotate %70 by %c383_i32_14 dim 1 : vector<8x384xf32>, i32 -> vector<8x384xf32>
    %c367_i32_15 = arith.constant 367 : i32
    %76 = tpu.dynamic_rotate %70 by %c367_i32_15 dim 1 : vector<8x384xf32>, i32 -> vector<8x384xf32>
    %c366_i32_16 = arith.constant 366 : i32
    %77 = tpu.dynamic_rotate %70 by %c366_i32_16 dim 1 : vector<8x384xf32>, i32 -> vector<8x384xf32>
    %c365_i32_17 = arith.constant 365 : i32
    %78 = tpu.dynamic_rotate %70 by %c365_i32_17 dim 1 : vector<8x384xf32>, i32 -> vector<8x384xf32>
    %79 = tpu.concatenate %71, %72, %73, %74, %70, %75, %76, %77, %78 in 0 : vector<8x384xf32>, vector<8x384xf32>, vector<8x384xf32>, vector<8x384xf32>, vector<8x384xf32>, vector<8x384xf32>, vector<8x384xf32>, vector<8x384xf32>, vector<8x384xf32> -> vector<72x384xf32>
    %80 = arith.truncf %79 : vector<72x384xf32> to vector<72x384xbf16>
    %c0_18 = arith.constant 0 : index
    %c0_19 = arith.constant 0 : index
    %81 = vector.load %arg6[%c0_18, %c0_19] : memref<8x72xbf16, #tpu.memory_space<vmem>>, vector<8x72xbf16>
    %82 = arith.truncf %22 : vector<72x384xf32> to vector<72x384xbf16>
    %cst_20 = arith.constant dense<0.000000e+00> : vector<8x384xf32>
    %83 = tpu.matmul %81, %82, %cst_20 {dimension_numbers = #tpu.dot_dimension_numbers<[1], [0], [0], [1], [0, 0, 1, 1], [], []>} : vector<8x72xbf16>, vector<72x384xbf16>, vector<8x384xf32> -> vector<8x384xf32>
    %c0_21 = arith.constant 0 : index
    %c0_22 = arith.constant 0 : index
    %84 = vector.load %arg5[%c0_21, %c0_22] : memref<8x72xbf16, #tpu.memory_space<vmem>>, vector<8x72xbf16>
    %cst_23 = arith.constant dense<0.000000e+00> : vector<8x384xf32>
    %85 = tpu.matmul %84, %80, %cst_23 {dimension_numbers = #tpu.dot_dimension_numbers<[1], [0], [0], [1], [0, 0, 1, 1], [], []>} : vector<8x72xbf16>, vector<72x384xbf16>, vector<8x384xf32> -> vector<8x384xf32>
    %86 = arith.addf %83, %85 : vector<8x384xf32>
    %87 = vector.broadcast %0 : vector<1x384xf32> to vector<8x384xf32>
    %88 = arith.mulf %86, %87 : vector<8x384xf32>
    %89 = arith.truncf %88 : vector<8x384xf32> to vector<8x384xbf16>
    %c0_24 = arith.constant 0 : index
    %c0_25 = arith.constant 0 : index
    %c0_26 = arith.constant 0 : index
    %90 = vector.load %arg8[%c0_24, %c0_25, %c0_26] : memref<1x8x384xbf16, #tpu.memory_space<vmem>>, vector<1x8x384xbf16>
    %91 = vector.shape_cast %90 : vector<1x8x384xbf16> to vector<8x384xbf16>
    %92 = vector.shape_cast %89 : vector<8x384xbf16> to vector<1x8x384xbf16>
    tpu.vector_store %arg8[%c0_24, %c0_25, %c0_26], %92 {strides = array<i32>} : memref<1x8x384xbf16, #tpu.memory_space<vmem>>, vector<1x8x384xbf16>,
    %cst_27 = arith.constant dense<0.000000e+00> : vector<8xf32>
    %93 = vector.multi_reduction <add>, %88, %cst_27 [1] : vector<8x384xf32> to vector<8xf32>
    %94 = vector.shape_cast %93 : vector<8xf32> to vector<8x1xf32>
    %95 = arith.mulf %88, %88 : vector<8x384xf32>
    %cst_28 = arith.constant dense<0.000000e+00> : vector<8xf32>
    %96 = vector.multi_reduction <add>, %95, %cst_28 [1] : vector<8x384xf32> to vector<8xf32>
    %97 = vector.shape_cast %96 : vector<8xf32> to vector<8x1xf32>
    %98 = tpu.concatenate %94, %97 in 1 : vector<8x1xf32>, vector<8x1xf32> -> vector<8x2xf32>
    %c0_29 = arith.constant 0 : index
    %c0_30 = arith.constant 0 : index
    %c0_31 = arith.constant 0 : index
    %99 = vector.load %arg9[%c0_29, %c0_30, %c0_31] : memref<1x8x2xf32, #tpu.memory_space<vmem>>, vector<1x8x2xf32>
    %100 = vector.shape_cast %99 : vector<1x8x2xf32> to vector<8x2xf32>
    %101 = vector.shape_cast %98 : vector<8x2xf32> to vector<1x8x2xf32>
    tpu.vector_store %arg9[%c0_29, %c0_30, %c0_31], %101 {strides = array<i32>} : memref<1x8x2xf32, #tpu.memory_space<vmem>>, vector<1x8x2xf32>,
    return
  }
  func.func @transform_0(%arg0: i32) -> (i32, i32, i32) {
    %c0_i32 = arith.constant 0 : i32
    %c0_i32_0 = arith.constant 0 : i32
    %c0_i32_1 = arith.constant 0 : i32
    return %arg0, %c0_i32, %c0_i32_0 : i32, i32, i32
  }
  func.func @transform_1(%arg0: i32) -> (i32, i32) {
    %c0_i32 = arith.constant 0 : i32
    %c0_i32_0 = arith.constant 0 : i32
    %c0_i32_1 = arith.constant 0 : i32
    return %c0_i32, %c0_i32_0 : i32, i32
  }
  func.func @transform_2(%arg0: i32) -> (i32, i32) {
    %c0_i32 = arith.constant 0 : i32
    %c0_i32_0 = arith.constant 0 : i32
    %c0_i32_1 = arith.constant 0 : i32
    return %c0_i32, %c0_i32_0 : i32, i32
  }
  func.func @transform_3(%arg0: i32) -> i32 {
    %c0_i32 = arith.constant 0 : i32
    %c0_i32_0 = arith.constant 0 : i32
    return %c0_i32 : i32
  }
  func.func @transform_4(%arg0: i32) -> (i32, i32) {
    %c0_i32 = arith.constant 0 : i32
    %c0_i32_0 = arith.constant 0 : i32
    %c0_i32_1 = arith.constant 0 : i32
    return %c0_i32, %c0_i32_0 : i32, i32
  }
  func.func @transform_5(%arg0: i32) -> (i32, i32) {
    %c0_i32 = arith.constant 0 : i32
    %c0_i32_0 = arith.constant 0 : i32
    %c0_i32_1 = arith.constant 0 : i32
    return %c0_i32, %c0_i32_0 : i32, i32
  }
  func.func @transform_6(%arg0: i32) -> (i32, i32) {
    %c0_i32 = arith.constant 0 : i32
    %c0_i32_0 = arith.constant 0 : i32
    %c0_i32_1 = arith.constant 0 : i32
    return %c0_i32, %c0_i32_0 : i32, i32
  }
  func.func @transform_7(%arg0: i32) -> (i32, i32, i32) {
    %c0_i32 = arith.constant 0 : i32
    %c0_i32_0 = arith.constant 0 : i32
    %c0_i32_1 = arith.constant 0 : i32
    return %arg0, %c0_i32, %c0_i32_0 : i32, i32, i32
  }
  func.func @transform_8(%arg0: i32) -> (i32, i32, i32) {
    %c0_i32 = arith.constant 0 : i32
    %c0_i32_0 = arith.constant 0 : i32
    %c0_i32_1 = arith.constant 0 : i32
    return %arg0, %c0_i32, %c0_i32_0 : i32, i32, i32
  }
}

</mosaic_0001>

<llo_original>
// kernel: conv2d_with_gauss3_forward.5
$region0: #{conv2d_with_gauss3_forward.5}
  #allocation0 [shape = 'u32[]', space=smem, size = 0x4, offset = 0x4, fixed_abs, tag = 'smem constant byte address 0x4 - core index']
  #allocation1 [shape = 'u32[144,128]{1,0:T(1,128)}', space=vmem, size = 0x12000, scoped, tag = 'internal scratch']
  %s0 = inlined_call_operand.vmem [shape: bf16[2,8,384], index: 0, kind: input, shape index: {}]
  %s1 = inlined_call_operand.vmem [shape: f32[8,1], index: 1, kind: input, shape index: {}]
  %s2 = inlined_call_operand.vmem [shape: f32[8,1], index: 2, kind: input, shape index: {}]
  %s3 = inlined_call_operand.vmem [shape: bf16[2,8,384], index: 3, kind: input, shape index: {}]
  %s4 = inlined_call_operand.vmem [shape: f32[8,1], index: 4, kind: input, shape index: {}]
  %s5 = inlined_call_operand.vmem [shape: f32[8,1], index: 5, kind: input, shape index: {}]
  %s6 = inlined_call_operand.vmem [shape: bf16[8,72], index: 6, kind: input, shape index: {}]
  %s7 = inlined_call_operand.vmem [shape: f32[1,384], index: 7, kind: input, shape index: {}]
  %s8 = inlined_call_operand.vmem [shape: bf16[2,8,384], index: 8, kind: output, shape index: {0}]
  %s9 = inlined_call_operand.vmem [shape: f32[2,8,2], index: 9, kind: output, shape index: {1}]
  %10 = xla_tuple %s8, %s9
  %s11 = sld [smem:[#allocation0]]
  $region73: #{conv2d_with_gauss3_forward.5} parent=0
    _
  %s13 = ssub.s32 1, %s11
  %s14 = scalar_select 0, %s13, %s11
  loop: start=0, step=1, limit=4
  $region2: #{conv2d_with_gauss3_forward.5} parent=0 // loop_pre_header
    _
  $region3: #{conv2d_with_gauss3_forward.5} parent=0 // loop_header
    %s16 = sphi 0, %s20
    %p17 = scmp.ge.s32.totalorder %s16, 4
    %s26 = sphi 0, %s28
    %s29 = sphi 0, %s26
    %s30 = sphi 0, %s29
    %s46 = sphi 0, %s30
    %s50 = sphi 0, %s50
    %s52 = sphi 0, %s50
    %s53 = sphi 0, %s52
    %s67 = sphi 0, %s53
    %s71 = sphi 0, %s71
    %s73 = sphi 0, %s71
    %s74 = sphi 0, %s73
    %s88 = sphi 0, %s74
    %s94 = sphi 0, %s96
    %s97 = sphi 0, %s94
    %s98 = sphi 0, %s97
    %s114 = sphi 0, %s98
    %s118 = sphi 0, %s118
    %s120 = sphi 0, %s118
    %s121 = sphi 0, %s120
    %s135 = sphi 0, %s121
    %s139 = sphi 0, %s139
    %s141 = sphi 0, %s139
    %s142 = sphi 0, %s141
    %s156 = sphi 0, %s142
    %s160 = sphi 0, %s160
    %s162 = sphi 0, %s160
    %s163 = sphi 0, %s162
    %s177 = sphi 0, %s163
    %s181 = sphi 0, %s181
    %s183 = sphi 0, %s181
    %s184 = sphi 0, %s183
    %s198 = sphi 0, %s184
    %s204 = sphi 0, %s206
    %s207 = sphi 0, %s204
    %s208 = sphi 0, %s207
    %s224 = sphi 0, %s208
    %s230 = sphi 0, %s232
    %s233 = sphi 0, %s230
    %s234 = sphi 0, %s233
    %s250 = sphi 0, %s234
  $region4: #{conv2d_with_gauss3_forward.5} parent=0 // loop_header_branch
    %19 = sbr.rel (%p17) target = $region8
  $region5: #{conv2d_with_gauss3_forward.5} parent=0 // loop_body
    %s21 = ssub.s32 %s16, 1
    %s22 = ssub.s32 %s16, 2
    %s23 = sadd.s32 %s16, 1
    %s24 = ssub.s32 %s16, %s23
    %p25 = scmp.eq.s32.totalorder %s24, 0
    %s27 = sadd.s32 %s26, 1
    %s28 = scalar_select %p25, %s26, %s27
    %p31 = pneg %p25
    %p32 = scmp.eq.s32.totalorder %s16, 1
    %p33 = por %p31, %p32
    %p34 = scmp.ne.s32.totalorder %s26, %s29
    %p35 = scmp.eq.s32.totalorder %s16, 0
    %p36 = por %p34, %p35
    %p37 = scmp.ne.s32.totalorder %s26, %s29
    %p38 = scmp.eq.s32.totalorder %s21, 1
    %p39 = por %p37, %p38
    %p40 = scmp.ne.s32.totalorder %s29, %s30
    %p41 = scmp.eq.s32.totalorder %s21, 0
    %p42 = por %p40, %p41
    %p43 = scmp.ne.s32.totalorder %s29, %s30
    %p44 = scmp.eq.s32.totalorder %s22, 1
    %p45 = por %p43, %p44
    %p47 = scmp.ne.s32.totalorder %s30, %s46
    %p48 = scmp.eq.s32.totalorder %s22, 0
    %p49 = por %p47, %p48
    %s51 = sadd.s32 %s50, 1
    %p54 = scmp.eq.s32.totalorder %s16, 1
    %p55 = scmp.ne.s32.totalorder %s50, %s52
    %p56 = scmp.eq.s32.totalorder %s16, 0
    %p57 = por %p55, %p56
    %p58 = scmp.ne.s32.totalorder %s50, %s52
    %p59 = scmp.eq.s32.totalorder %s21, 1
    %p60 = por %p58, %p59
    %p61 = scmp.ne.s32.totalorder %s52, %s53
    %p62 = scmp.eq.s32.totalorder %s21, 0
    %p63 = por %p61, %p62
    %p64 = scmp.ne.s32.totalorder %s52, %s53
    %p65 = scmp.eq.s32.totalorder %s22, 1
    %p66 = por %p64, %p65
    %p68 = scmp.ne.s32.totalorder %s53, %s67
    %p69 = scmp.eq.s32.totalorder %s22, 0
    %p70 = por %p68, %p69
    %s72 = sadd.s32 %s71, 1
    %p75 = scmp.eq.s32.totalorder %s16, 1
    %p76 = scmp.ne.s32.totalorder %s71, %s73
    %p77 = scmp.eq.s32.totalorder %s16, 0
    %p78 = por %p76, %p77
    %p79 = scmp.ne.s32.totalorder %s71, %s73
    %p80 = scmp.eq.s32.totalorder %s21, 1
    %p81 = por %p79, %p80
    %p82 = scmp.ne.s32.totalorder %s73, %s74
    %p83 = scmp.eq.s32.totalorder %s21, 0
    %p84 = por %p82, %p83
    %p85 = scmp.ne.s32.totalorder %s73, %s74
    %p86 = scmp.eq.s32.totalorder %s22, 1
    %p87 = por %p85, %p86
    %p89 = scmp.ne.s32.totalorder %s74, %s88
    %p90 = scmp.eq.s32.totalorder %s22, 0
    %p91 = por %p89, %p90
    %s92 = ssub.s32 %s16, %s23
    %p93 = scmp.eq.s32.totalorder %s92, 0
    %s95 = sadd.s32 %s94, 1
    %s96 = scalar_select %p93, %s94, %s95
    %p99 = pneg %p93
    %p100 = scmp.eq.s32.totalorder %s16, 1
    %p101 = por %p99, %p100
    %p102 = scmp.ne.s32.totalorder %s94, %s97
    %p103 = scmp.eq.s32.totalorder %s16, 0
    %p104 = por %p102, %p103
    %p105 = scmp.ne.s32.totalorder %s94, %s97
    %p106 = scmp.eq.s32.totalorder %s21, 1
    %p107 = por %p105, %p106
    %p108 = scmp.ne.s32.totalorder %s97, %s98
    %p109 = scmp.eq.s32.totalorder %s21, 0
    %p110 = por %p108, %p109
    %p111 = scmp.ne.s32.totalorder %s97, %s98
    %p112 = scmp.eq.s32.totalorder %s22, 1
    %p113 = por %p111, %p112
    %p115 = scmp.ne.s32.totalorder %s98, %s114
    %p116 = scmp.eq.s32.totalorder %s22, 0
    %p117 = por %p115, %p116
    %s119 = sadd.s32 %s118, 1
    %p122 = scmp.eq.s32.totalorder %s16, 1
    %p123 = scmp.ne.s32.totalorder %s118, %s120
    %p124 = scmp.eq.s32.totalorder %s16, 0
    %p125 = por %p123, %p124
    %p126 = scmp.ne.s32.totalorder %s118, %s120
    %p127 = scmp.eq.s32.totalorder %s21, 1
    %p128 = por %p126, %p127
    %p129 = scmp.ne.s32.totalorder %s120, %s121
    %p130 = scmp.eq.s32.totalorder %s21, 0
    %p131 = por %p129, %p130
    %p132 = scmp.ne.s32.totalorder %s120, %s121
    %p133 = scmp.eq.s32.totalorder %s22, 1
    %p134 = por %p132, %p133
    %p136 = scmp.ne.s32.totalorder %s121, %s135
    %p137 = scmp.eq.s32.totalorder %s22, 0
    %p138 = por %p136, %p137
    %s140 = sadd.s32 %s139, 1
    %p143 = scmp.eq.s32.totalorder %s16, 1
    %p144 = scmp.ne.s32.totalorder %s139, %s141
    %p145 = scmp.eq.s32.totalorder %s16, 0
    %p146 = por %p144, %p145
    %p147 = scmp.ne.s32.totalorder %s139, %s141
    %p148 = scmp.eq.s32.totalorder %s21, 1
    %p149 = por %p147, %p148
    %p150 = scmp.ne.s32.totalorder %s141, %s142
    %p151 = scmp.eq.s32.totalorder %s21, 0
    %p152 = por %p150, %p151
    %p153 = scmp.ne.s32.totalorder %s141, %s142
    %p154 = scmp.eq.s32.totalorder %s22, 1
    %p155 = por %p153, %p154
    %p157 = scmp.ne.s32.totalorder %s142, %s156
    %p158 = scmp.eq.s32.totalorder %s22, 0
    %p159 = por %p157, %p158
    %s161 = sadd.s32 %s160, 1
    %p164 = scmp.eq.s32.totalorder %s16, 1
    %p165 = scmp.ne.s32.totalorder %s160, %s162
    %p166 = scmp.eq.s32.totalorder %s16, 0
    %p167 = por %p165, %p166
    %p168 = scmp.ne.s32.totalorder %s160, %s162
    %p169 = scmp.eq.s32.totalorder %s21, 1
    %p170 = por %p168, %p169
    %p171 = scmp.ne.s32.totalorder %s162, %s163
    %p172 = scmp.eq.s32.totalorder %s21, 0
    %p173 = por %p171, %p172
    %p174 = scmp.ne.s32.totalorder %s162, %s163
    %p175 = scmp.eq.s32.totalorder %s22, 1
    %p176 = por %p174, %p175
    %p178 = scmp.ne.s32.totalorder %s163, %s177
    %p179 = scmp.eq.s32.totalorder %s22, 0
    %p180 = por %p178, %p179
    %s182 = sadd.s32 %s181, 1
    %p185 = scmp.eq.s32.totalorder %s16, 1
    %p186 = scmp.ne.s32.totalorder %s181, %s183
    %p187 = scmp.eq.s32.totalorder %s16, 0
    %p188 = por %p186, %p187
    %p189 = scmp.ne.s32.totalorder %s181, %s183
    %p190 = scmp.eq.s32.totalorder %s21, 1
    %p191 = por %p189, %p190
    %p192 = scmp.ne.s32.totalorder %s183, %s184
    %p193 = scmp.eq.s32.totalorder %s21, 0
    %p194 = por %p192, %p193
    %p195 = scmp.ne.s32.totalorder %s183, %s184
    %p196 = scmp.eq.s32.totalorder %s22, 1
    %p197 = por %p195, %p196
    %p199 = scmp.ne.s32.totalorder %s184, %s198
    %p200 = scmp.eq.s32.totalorder %s22, 0
    %p201 = por %p199, %p200
    %s202 = ssub.s32 %s16, %s23
    %p203 = scmp.eq.s32.totalorder %s202, 0
    %s205 = sadd.s32 %s204, 1
    %s206 = scalar_select %p203, %s204, %s205
    %p209 = pneg %p203
    %p210 = scmp.eq.s32.totalorder %s16, 1
    %p211 = por %p209, %p210
    %p212 = scmp.ne.s32.totalorder %s204, %s207
    %p213 = scmp.eq.s32.totalorder %s16, 0
    %p214 = por %p212, %p213
    %p215 = scmp.ne.s32.totalorder %s204, %s207
    %p216 = scmp.eq.s32.totalorder %s21, 1
    %p217 = por %p215, %p216
    %p218 = scmp.ne.s32.totalorder %s207, %s208
    %p219 = scmp.eq.s32.totalorder %s21, 0
    %p220 = por %p218, %p219
    %p221 = scmp.ne.s32.totalorder %s207, %s208
    %p222 = scmp.eq.s32.totalorder %s22, 1
    %p223 = por %p221, %p222
    %p225 = scmp.ne.s32.totalorder %s208, %s224
    %p226 = scmp.eq.s32.totalorder %s22, 0
    %p227 = por %p225, %p226
    %s228 = ssub.s32 %s16, %s23
    %p229 = scmp.eq.s32.totalorder %s228, 0
    %s231 = sadd.s32 %s230, 1
    %s232 = scalar_select %p229, %s230, %s231
    %p235 = pneg %p229
    %p236 = scmp.eq.s32.totalorder %s16, 1
    %p237 = por %p235, %p236
    %p238 = scmp.ne.s32.totalorder %s230, %s233
    %p239 = scmp.eq.s32.totalorder %s16, 0
    %p240 = por %p238, %p239
    %p241 = scmp.ne.s32.totalorder %s230, %s233
    %p242 = scmp.eq.s32.totalorder %s21, 1
    %p243 = por %p241, %p242
    %p244 = scmp.ne.s32.totalorder %s233, %s234
    %p245 = scmp.eq.s32.totalorder %s21, 0
    %p246 = por %p244, %p245
    %p247 = scmp.ne.s32.totalorder %s233, %s234
    %p248 = scmp.eq.s32.totalorder %s22, 1
    %p249 = por %p247, %p248
    %p251 = scmp.ne.s32.totalorder %s234, %s250
    %p252 = scmp.eq.s32.totalorder %s22, 0
    %p253 = por %p251, %p252
    %p254 = scmp.le.s32.totalorder 1, %s16
    %p255 = scmp.lt.s32.totalorder %s16, 3
    %p256 = pnand %p254, %p255
    %p257 = pneg %p256
    // Predicated region
    $region9: #{conv2d_with_gauss3_forward.5} parent=5 // pred_check
      _
    $region10: #{conv2d_with_gauss3_forward.5} parent=5 // pred_check_branch
      %259 = sbr.rel (%p256) target = $region12
    $region11: #{conv2d_with_gauss3_forward.5} parent=5 // pred_region
      %s260 = ssub.s32 %s16, 1
      // Predicated region
      $region13: #{conv2d_with_gauss3_forward.5} parent=11 // pred_check
        %p261 = pneg %p63
      $region14: #{conv2d_with_gauss3_forward.5} parent=11 // pred_check_branch
        %263 = sbr.rel (%p261) target = $region16
      $region15: #{conv2d_with_gauss3_forward.5} parent=11 // pred_region
        _
      $region16: #{conv2d_with_gauss3_forward.5} parent=11 // pred_fallthru
        _
      // Predicated region
      $region17: #{conv2d_with_gauss3_forward.5} parent=11 // pred_check
        %p264 = pneg %p84
      $region18: #{conv2d_with_gauss3_forward.5} parent=11 // pred_check_branch
        %266 = sbr.rel (%p264) target = $region20
      $region19: #{conv2d_with_gauss3_forward.5} parent=11 // pred_region
        _
      $region20: #{conv2d_with_gauss3_forward.5} parent=11 // pred_fallthru
        _
      // Predicated region
      $region21: #{conv2d_with_gauss3_forward.5} parent=11 // pred_check
        %p267 = pneg %p131
      $region22: #{conv2d_with_gauss3_forward.5} parent=11 // pred_check_branch
        %269 = sbr.rel (%p267) target = $region24
      $region23: #{conv2d_with_gauss3_forward.5} parent=11 // pred_region
        _
      $region24: #{conv2d_with_gauss3_forward.5} parent=11 // pred_fallthru
        _
      // Predicated region
      $region25: #{conv2d_with_gauss3_forward.5} parent=11 // pred_check
        %p270 = pneg %p152
      $region26: #{conv2d_with_gauss3_forward.5} parent=11 // pred_check_branch
        %272 = sbr.rel (%p270) target = $region28
      $region27: #{conv2d_with_gauss3_forward.5} parent=11 // pred_region
        _
      $region28: #{conv2d_with_gauss3_forward.5} parent=11 // pred_fallthru
        _
      // Predicated region
      $region29: #{conv2d_with_gauss3_forward.5} parent=11 // pred_check
        %p273 = pneg %p173
      $region30: #{conv2d_with_gauss3_forward.5} parent=11 // pred_check_branch
        %275 = sbr.rel (%p273) target = $region32
      $region31: #{conv2d_with_gauss3_forward.5} parent=11 // pred_region
        _
      $region32: #{conv2d_with_gauss3_forward.5} parent=11 // pred_fallthru
        _
      // Predicated region
      $region33: #{conv2d_with_gauss3_forward.5} parent=11 // pred_check
        %p276 = pneg %p194
      $region34: #{conv2d_with_gauss3_forward.5} parent=11 // pred_check_branch
        %278 = sbr.rel (%p276) target = $region36
      $region35: #{conv2d_with_gauss3_forward.5} parent=11 // pred_region
        _
      $region36: #{conv2d_with_gauss3_forward.5} parent=11 // pred_fallthru
        _
    $region12: #{conv2d_with_gauss3_forward.5} parent=5 // pred_fallthru
      _
    %p279 = scmp.lt.s32.totalorder %s16, 2
    // Predicated region
    $region37: #{conv2d_with_gauss3_forward.5} parent=5 // pred_check
      %p280 = pneg %p279
    $region38: #{conv2d_with_gauss3_forward.5} parent=5 // pred_check_branch
      %282 = sbr.rel (%p280) target = $region40
    $region39: #{conv2d_with_gauss3_forward.5} parent=5 // pred_region
      // Predicated region
      $region41: #{conv2d_with_gauss3_forward.5} parent=39 // pred_check
        %p283 = pneg %p36
      $region42: #{conv2d_with_gauss3_forward.5} parent=39 // pred_check_branch
        %285 = sbr.rel (%p283) target = $region44
      $region43: #{conv2d_with_gauss3_forward.5} parent=39 // pred_region
        %p286 = scmp.lt.s32.totalorder %s16, 1
        %s287 = scalar_select %p286, %s16, 1
        %s288 = smul.addr %s287, 3
        %s289 = smul.addr %s288, 4
        %s290 = scalar_lea.vmem %s0, %s289
      $region44: #{conv2d_with_gauss3_forward.5} parent=39 // pred_fallthru
        _
      // Predicated region
      $region45: #{conv2d_with_gauss3_forward.5} parent=39 // pred_check
        %p291 = pneg %p104
      $region46: #{conv2d_with_gauss3_forward.5} parent=39 // pred_check_branch
        %293 = sbr.rel (%p291) target = $region48
      $region47: #{conv2d_with_gauss3_forward.5} parent=39 // pred_region
        %p294 = scmp.lt.s32.totalorder %s16, 1
        %s295 = scalar_select %p294, %s16, 1
        %s296 = smul.addr %s295, 3
        %s297 = smul.addr %s296, 4
        %s298 = scalar_lea.vmem %s3, %s297
      $region48: #{conv2d_with_gauss3_forward.5} parent=39 // pred_fallthru
        _
    $region40: #{conv2d_with_gauss3_forward.5} parent=5 // pred_fallthru
      _
    %p299 = scmp.le.s32.totalorder 1, %s16
    %p300 = scmp.lt.s32.totalorder %s16, 3
    %p301 = pnand %p299, %p300
    %p302 = pneg %p301
    // Predicated region
    $region49: #{conv2d_with_gauss3_forward.5} parent=5 // pred_check
      _
    $region50: #{conv2d_with_gauss3_forward.5} parent=5 // pred_check_branch
      %304 = sbr.rel (%p301) target = $region52
    $region51: #{conv2d_with_gauss3_forward.5} parent=5 // pred_region
      %s305 = ssub.s32 %s16, 1
      %p306 = scmp.lt.s32.totalorder %s21, 1
      %s307 = scalar_select %p306, %s21, 1
      %s308 = smul.addr %s307, 3
      %s309 = smul.addr %s308, 4
      %s310 = scalar_lea.vmem %s0, %s309
      %p311 = pneg %p42
      %p312 = pneg %p39
      %p313 = pneg %p63
      %p314 = pneg %p60
      %p315 = pneg %p84
      %p316 = pneg %p81
      %p317 = scmp.lt.s32.totalorder %s21, 1
      %s318 = scalar_select %p317, %s21, 1
      %s319 = smul.addr %s318, 3
      %s320 = smul.addr %s319, 4
      %s321 = scalar_lea.vmem %s3, %s320
      %p322 = pneg %p110
      %p323 = pneg %p107
      %p324 = pneg %p131
      %p325 = pneg %p128
      %p326 = pneg %p152
      %p327 = pneg %p149
      %p328 = pneg %p173
      %p329 = pneg %p170
      %p330 = pneg %p194
      %p331 = pneg %p191
      %p332 = pneg %p220
      %p333 = pneg %p217
      %p334 = scmp.lt.s32.totalorder %s21, 1
      %s335 = scalar_select %p334, %s21, 1
      %s336 = smul.addr %s335, 3
      %s337 = smul.addr %s336, 4
      %s338 = scalar_lea.vmem %s8, %s337
      %p339 = pneg %p246
      %p340 = pneg %p243
      %p341 = scmp.lt.s32.totalorder %s21, 1
      %s342 = scalar_select %p341, %s21, 1
      %s343 = smul.addr %s342, 8
      %s344 = scalar_lea.vmem %s9, %s343
      %p345 = scmp.lt.s32.totalorder %s21, 1
      %s346 = scalar_select %p345, %s21, 1
      %s347 = smul.addr %s346, 3
      %s348 = smul.addr %s347, 4
      %s349 = scalar_lea.vmem %s0, %s348
      %p350 = scmp.lt.s32.totalorder %s21, 1
      %s351 = scalar_select %p350, %s21, 1
      %s352 = smul.addr %s351, 3
      %s353 = smul.addr %s352, 4
      %s354 = scalar_lea.vmem %s3, %s353
      %p355 = scmp.lt.s32.totalorder %s21, 1
      %s356 = scalar_select %p355, %s21, 1
      %s357 = smul.addr %s356, 3
      %s358 = smul.addr %s357, 4
      %s359 = scalar_lea.vmem %s8, %s358
      %p360 = scmp.lt.s32.totalorder %s21, 1
      %s361 = scalar_select %p360, %s21, 1
      %s362 = smul.addr %s361, 8
      %s363 = scalar_lea.vmem %s9, %s362
      %v365 = vld [vmem:[%s7] sm:$0x7]
      %v366 = vld [vmem:[%s1] sm:$0xff]
      %v367 = vld [vmem:[%s349] sm:$0xff]
      %v368 = vld [vmem:[%s349 + $0x8] sm:$0xf]
      %v369 = vunpack.c.l.bf16 %v367
      %v370 = vunpack.c.h.bf16 %v367
      %v371 = vunpack.c.l.bf16 %v368
      %373 = vset.pattern.permute.xlu0 0
      %374 = vperm.xlu0 %373, %v366
      %v375 = vpop.permute.xlu0 %374
      %v377 = vmul.f32 %v375, %v369
      %v378 = vmul.f32 %v375, %v370
      %v379 = vmul.f32 %v375, %v371
      %v380 = vld [vmem:[%s2] sm:$0xff]
      %382 = vset.pattern.permute.xlu0 0
      %383 = vperm.xlu0 %382, %v380
      %v384 = vpop.permute.xlu0 %383
      %v386 = vadd.f32 %v377, %v384
      %v387 = vadd.f32 %v378, %v384
      %v388 = vadd.f32 %v379, %v384
      %v389 = vmax.f32 %v386, 0.0
      %v390 = vmax.f32 %v387, 0.0
      %v391 = vmax.f32 %v388, 0.0
      %v392 = vld [vmem:[%s4] sm:$0xff]
      %v393 = vld [vmem:[%s354] sm:$0xff]
      %v394 = vld [vmem:[%s354 + $0x8] sm:$0xf]
      %v395 = vunpack.c.l.bf16 %v393
      %v396 = vunpack.c.h.bf16 %v393
      %v397 = vunpack.c.l.bf16 %v394
      %399 = vset.pattern.permute.xlu0 0
      %400 = vperm.xlu0 %399, %v392
      %v401 = vpop.permute.xlu0 %400
      %v403 = vmul.f32 %v401, %v395
      %v404 = vmul.f32 %v401, %v396
      %v405 = vmul.f32 %v401, %v397
      %v406 = vld [vmem:[%s5] sm:$0xff]
      %408 = vset.pattern.permute.xlu0 0
      %409 = vperm.xlu0 %408, %v406
      %v410 = vpop.permute.xlu0 %409
      %v412 = vadd.f32 %v403, %v410
      %v413 = vadd.f32 %v404, %v410
      %v414 = vadd.f32 %v405, %v410
      %v415 = vmax.f32 %v412, 0.0
      %v416 = vmax.f32 %v413, 0.0
      %v417 = vmax.f32 %v414, 0.0
      %v418 = vadd.f32 %v389, %v415
      %v419 = vadd.f32 %v390, %v416
      %v420 = vadd.f32 %v391, %v417
      %v422 = vlaneseq
      %v423 = vshrl.u32 %v422, 7
      %v424 = vsub.s32 0, %v423
      %v425 = vrot.slane %v365, %v424
      %v426 = vlaneseq
      %v427 = vshrl.u32 %v426, 7
      %v428 = vsub.s32 1, %v427
      %v429 = vrot.slane %v365, %v428
      %v430 = vlaneseq
      %v431 = vshrl.u32 %v430, 7
      %v432 = vsub.s32 2, %v431
      %v433 = vrot.slane %v365, %v432
      %v437 = vmul.f32 %v418, %v425
      %v438 = vmul.f32 %v419, %v429
      %v439 = vmul.f32 %v420, %v433
      %440 = vrot.lane.b32.xlu0 %v437, 19
      %v441 = vpop.permute.xlu0 %440
      %442 = vrot.lane.b32.xlu0 %v438, 19
      %v443 = vpop.permute.xlu0 %442
      %444 = vrot.lane.b32.xlu0 %v439, 19
      %v445 = vpop.permute.xlu0 %444
      %v446 = vlaneseq
      %v447 = vand.u32 %v446, 127
      %vm448 = vcmp.lt.s32.totalorder %v447, 19
      %v449 = vsel %vm448, %v443, %v445
      %v450 = vsel %vm448, %v441, %v443
      %v451 = vsel %vm448, %v445, %v441
      %452 = vrot.lane.b32.xlu0 %v437, 18
      %v453 = vpop.permute.xlu0 %452
      %454 = vrot.lane.b32.xlu0 %v438, 18
      %v455 = vpop.permute.xlu0 %454
      %456 = vrot.lane.b32.xlu0 %v439, 18
      %v457 = vpop.permute.xlu0 %456
      %vm458 = vcmp.lt.s32.totalorder %v447, 18
      %v459 = vsel %vm458, %v455, %v457
      %v460 = vsel %vm458, %v453, %v455
      %v461 = vsel %vm458, %v457, %v453
      %462 = vrot.lane.b32.xlu0 %v437, 17
      %v463 = vpop.permute.xlu0 %462
      %464 = vrot.lane.b32.xlu0 %v438, 17
      %v465 = vpop.permute.xlu0 %464
      %466 = vrot.lane.b32.xlu0 %v439, 17
      %v467 = vpop.permute.xlu0 %466
      %vm468 = vcmp.lt.s32.totalorder %v447, 17
      %v469 = vsel %vm468, %v465, %v467
      %v470 = vsel %vm468, %v463, %v465
      %v471 = vsel %vm468, %v467, %v463
      %472 = vrot.lane.b32.xlu0 %v437, 1
      %v473 = vpop.permute.xlu0 %472
      %474 = vrot.lane.b32.xlu0 %v438, 1
      %v475 = vpop.permute.xlu0 %474
      %476 = vrot.lane.b32.xlu0 %v439, 1
      %v477 = vpop.permute.xlu0 %476
      %vm478 = vcmp.lt.s32.totalorder %v447, 1
      %v479 = vsel %vm478, %v475, %v477
      %v480 = vsel %vm478, %v473, %v475
      %v481 = vsel %vm478, %v477, %v473
      %482 = vrot.lane.b32.xlu0 %v437, 127
      %v483 = vpop.permute.xlu0 %482
      %484 = vrot.lane.b32.xlu0 %v438, 127
      %v485 = vpop.permute.xlu0 %484
      %486 = vrot.lane.b32.xlu0 %v439, 127
      %v487 = vpop.permute.xlu0 %486
      %vm488 = vcmp.lt.s32.totalorder %v447, 127
      %v489 = vsel %vm488, %v485, %v487
      %v490 = vsel %vm488, %v483, %v485
      %v491 = vsel %vm488, %v487, %v483
      %492 = vrot.lane.b32.xlu0 %v437, 111
      %v493 = vpop.permute.xlu0 %492
      %494 = vrot.lane.b32.xlu0 %v438, 111
      %v495 = vpop.permute.xlu0 %494
      %496 = vrot.lane.b32.xlu0 %v439, 111
      %v497 = vpop.permute.xlu0 %496
      %vm498 = vcmp.lt.s32.totalorder %v447, 111
      %v499 = vsel %vm498, %v495, %v497
      %v500 = vsel %vm498, %v493, %v495
      %v501 = vsel %vm498, %v497, %v493
      %502 = vrot.lane.b32.xlu0 %v437, 110
      %v503 = vpop.permute.xlu0 %502
      %504 = vrot.lane.b32.xlu0 %v438, 110
      %v505 = vpop.permute.xlu0 %504
      %506 = vrot.lane.b32.xlu0 %v439, 110
      %v507 = vpop.permute.xlu0 %506
      %vm508 = vcmp.lt.s32.totalorder %v447, 110
      %v509 = vsel %vm508, %v505, %v507
      %v510 = vsel %vm508, %v503, %v505
      %v511 = vsel %vm508, %v507, %v503
      %512 = vrot.lane.b32.xlu0 %v437, 109
      %v513 = vpop.permute.xlu0 %512
      %514 = vrot.lane.b32.xlu0 %v438, 109
      %v515 = vpop.permute.xlu0 %514
      %516 = vrot.lane.b32.xlu0 %v439, 109
      %v517 = vpop.permute.xlu0 %516
      %vm518 = vcmp.lt.s32.totalorder %v447, 109
      %v519 = vsel %vm518, %v515, %v517
      %v520 = vsel %vm518, %v513, %v515
      %v521 = vsel %vm518, %v517, %v513
      %v522 = vpack.c.bf16 %v461, %v451
      %v523 = vpack.c.bf16 %v460, %v450
      %v524 = vpack.c.bf16 %v459, %v449
      %v525 = vpack.c.bf16 %v481, %v471
      %v526 = vpack.c.bf16 %v480, %v470
      %v527 = vpack.c.bf16 %v479, %v469
      %v528 = vpack.c.bf16 %v490, %v437
      %v529 = vpack.c.bf16 %v489, %v438
      %v530 = vpack.c.bf16 %v491, %v439
      %v531 = vpack.c.bf16 %v510, %v500
      %v532 = vpack.c.bf16 %v509, %v499
      %v533 = vpack.c.bf16 %v511, %v501
      %v534 = vpack.c.bf16 %v520, %v520
      %v535 = vpack.c.bf16 %v519, %v519
      %v536 = vpack.c.bf16 %v521, %v521
      %v537 = vld [vmem:[%s6] sm:$0xf]
      %vm538 = vcmask 588800
      %v540 = vsel %vm538, %v537, 0
      %vm542 = vcmask 1043456
      %v544 = vsel %vm542, %v534, 0
      %v547 = vsel %vm542, %v535, 0
      %v550 = vsel %vm542, %v536, 0
      %552 = vmatprep.subr.bf16.mxu0 %v523
      %553 = vmatpush1.bf16.msra.mxu0 %v522
      %554 = vmatprep.subr.bf16.mxu0 %v526
      %555 = vmatpush1.bf16.msra.mxu0 %v525
      %556 = vmatprep.subr.bf16.mxu0 %v529
      %557 = vmatpush1.bf16.msra.mxu0 %v528
      %558 = vmatprep.subr.bf16.mxu0 %v532
      %559 = vmatpush1.bf16.msra.mxu0 %v531
      %560 = vmatprep.subr.bf16.mxu0 %v547
      %561 = vmatpush1.bf16.msra.mxu0 %v544
      %562 = vmatprep.subr.bf16.mxu0 0
      %563 = vmatpush1.bf16.msra.mxu0 0
      %564 = vmatprep.subr.bf16.mxu0 0
      %565 = vmatpush1.bf16.msra.mxu0 0
      %566 = vmatprep.subr.bf16.mxu0 0
      %567 = vmatpush1.bf16.msra.mxu0 0
      %568 = vmatprep.subr.bf16.mxu0 0
      %569 = vmatpush1.bf16.msra.mxu0 0
      %570 = vmatprep.subr.bf16.mxu0 0
      %571 = vmatpush1.bf16.msra.mxu0 0
      %572 = vmatprep.subr.bf16.mxu0 0
      %573 = vmatpush1.bf16.msra.mxu0 0
      %574 = vmatprep.subr.bf16.mxu0 0
      %575 = vmatpush1.bf16.msra.mxu0 0
      %576 = vmatprep.subr.bf16.mxu0 0
      %577 = vmatpush1.bf16.msra.mxu0 0
      %578 = vmatprep.subr.bf16.mxu0 0
      %579 = vmatpush1.bf16.msra.mxu0 0
      %580 = vmatprep.subr.bf16.mxu0 0
      %581 = vmatpush1.bf16.msra.mxu0 0
      %582 = vmatprep.subr.bf16.mxu0 0
      %583 = vmatpush1.bf16.msra.mxu0 0
      %584 = vmatprep.mubr.bf16.mxu0 0
      %585 = vmatmul.mubr.bf16.gmra.mrb[0].mxu0 %v540
      %v586 = vpop.f32.mrb[0].mxu0
      %v587 = vadd.f32 0.0, %v586
      %v588 = vpop.f32.mrb[0].mxu0
      %v589 = vadd.f32 0.0, %v588
      %v590 = vpop.f32.mrb[0].mxu0
      %v591 = vpop.f32.mrb[0].mxu0
      %592 = vdwg.mxu0
      %593 = vmatprep.subr.bf16.mxu0 0
      %594 = vmatpush1.bf16.msra.mxu0 %v524
      %595 = vmatprep.subr.bf16.mxu0 0
      %596 = vmatpush1.bf16.msra.mxu0 %v527
      %597 = vmatprep.subr.bf16.mxu0 0
      %598 = vmatpush1.bf16.msra.mxu0 %v530
      %599 = vmatprep.subr.bf16.mxu0 0
      %600 = vmatpush1.bf16.msra.mxu0 %v533
      %601 = vmatprep.subr.bf16.mxu0 0
      %602 = vmatpush1.bf16.msra.mxu0 %v550
      %603 = vmatprep.subr.bf16.mxu0 0
      %604 = vmatpush1.bf16.msra.mxu0 0
      %605 = vmatprep.subr.bf16.mxu0 0
      %606 = vmatpush1.bf16.msra.mxu0 0
      %607 = vmatprep.subr.bf16.mxu0 0
      %608 = vmatpush1.bf16.msra.mxu0 0
      %609 = vmatprep.subr.bf16.mxu0 0
      %610 = vmatpush1.bf16.msra.mxu0 0
      %611 = vmatprep.subr.bf16.mxu0 0
      %612 = vmatpush1.bf16.msra.mxu0 0
      %613 = vmatprep.subr.bf16.mxu0 0
      %614 = vmatpush1.bf16.msra.mxu0 0
      %615 = vmatprep.subr.bf16.mxu0 0
      %616 = vmatpush1.bf16.msra.mxu0 0
      %617 = vmatprep.subr.bf16.mxu0 0
      %618 = vmatpush1.bf16.msra.mxu0 0
      %619 = vmatprep.subr.bf16.mxu0 0
      %620 = vmatpush1.bf16.msra.mxu0 0
      %621 = vmatprep.subr.bf16.mxu0 0
      %622 = vmatpush1.bf16.msra.mxu0 0
      %623 = vmatprep.subr.bf16.mxu0 0
      %624 = vmatpush1.bf16.msra.mxu0 0
      %625 = vmatprep.mubr.bf16.mxu0 0
      %626 = vmatmul.mubr.bf16.gmra.mrb[0].mxu0 %v540
      %v627 = vpop.f32.mrb[0].mxu0
      %v628 = vadd.f32 0.0, %v627
      %v629 = vpop.f32.mrb[0].mxu0
      %v630 = vpop.f32.mrb[0].mxu0
      %v631 = vpop.f32.mrb[0].mxu0
      %632 = vdwg.mxu0
      %v633 = vmul.f32 %v587, %v425
      %v634 = vmul.f32 %v589, %v429
      %v635 = vmul.f32 %v628, %v433
      %v636 = vpack.c.bf16 %v633, %v633
      %v637 = vpack.c.bf16 %v634, %v634
      %v638 = vpack.c.bf16 %v635, %v635
      %v642 = vunpack.c.l.b16 %v636
      %v643 = vunpack.c.l.b16 %v637
      %v644 = vunpack.c.l.b16 %v638
      %v645 = vpack.c.b16 %v643, %v642
      %v646 = vpack.c.b16 %v644, %v644
      %649 = vst [vmem:[%s359] sm:$0xff] %v645
      %650 = vst [vmem:[%s359 + $0x8] sm:$0xf] %v646
      %v651 = vadd.f32 %v633, %v634
      %v652 = vadd.f32 %v651, %v635
      %653 = vadd.xlane.f32.xlu0 %v652
      %v654 = vpop.xlane.xlu0 %653
      %v655 = vmul.f32 %v633, %v633
      %v656 = vmul.f32 %v634, %v634
      %v657 = vmul.f32 %v635, %v635
      %v658 = vadd.f32 %v655, %v656
      %v659 = vadd.f32 %v658, %v657
      %660 = vadd.xlane.f32.xlu0 %v659
      %v661 = vpop.xlane.xlu0 %660
      %vm662 = vcmask 7168
      %v663 = vsel %vm662, %v654, %v661
      %vm664 = vcmask 15360
      %665 = vst.msk [vmem:[%s363] sm:$0xff] %vm664, %v663
      %p666 = scmp.lt.s32.totalorder %s21, 1
      %s667 = scalar_select %p666, %s21, 1
      %s668 = smul.addr %s667, 3
      %s669 = smul.addr %s668, 4
      %s670 = scalar_lea.vmem %s8, %s669
      %p671 = scmp.lt.s32.totalorder %s21, 1
      %s672 = scalar_select %p671, %s21, 1
      %s673 = smul.addr %s672, 8
      %s674 = scalar_lea.vmem %s9, %s673
      // Predicated region
      $region53: #{conv2d_with_gauss3_forward.5} parent=51 // pred_check
        %p675 = pneg %p217
      $region54: #{conv2d_with_gauss3_forward.5} parent=51 // pred_check_branch
        %677 = sbr.rel (%p675) target = $region56
      $region55: #{conv2d_with_gauss3_forward.5} parent=51 // pred_region
        _
      $region56: #{conv2d_with_gauss3_forward.5} parent=51 // pred_fallthru
        _
      // Predicated region
      $region57: #{conv2d_with_gauss3_forward.5} parent=51 // pred_check
        %p678 = pneg %p243
      $region58: #{conv2d_with_gauss3_forward.5} parent=51 // pred_check_branch
        %680 = sbr.rel (%p678) target = $region60
      $region59: #{conv2d_with_gauss3_forward.5} parent=51 // pred_region
        _
      $region60: #{conv2d_with_gauss3_forward.5} parent=51 // pred_fallthru
        _
    $region52: #{conv2d_with_gauss3_forward.5} parent=5 // pred_fallthru
      _
    %p681 = scmp.le.s32.totalorder 2, %s16
    // Predicated region
    $region61: #{conv2d_with_gauss3_forward.5} parent=5 // pred_check
      %p682 = pneg %p681
    $region62: #{conv2d_with_gauss3_forward.5} parent=5 // pred_check_branch
      %684 = sbr.rel (%p682) target = $region64
    $region63: #{conv2d_with_gauss3_forward.5} parent=5 // pred_region
      %s685 = ssub.s32 %s16, 2
      // Predicated region
      $region65: #{conv2d_with_gauss3_forward.5} parent=63 // pred_check
        %p686 = pneg %p223
      $region66: #{conv2d_with_gauss3_forward.5} parent=63 // pred_check_branch
        %688 = sbr.rel (%p686) target = $region68
      $region67: #{conv2d_with_gauss3_forward.5} parent=63 // pred_region
        %p689 = scmp.lt.s32.totalorder %s22, 1
        %s690 = scalar_select %p689, %s22, 1
        %s691 = smul.addr %s690, 3
        %s692 = smul.addr %s691, 4
        %s693 = scalar_lea.vmem %s8, %s692
      $region68: #{conv2d_with_gauss3_forward.5} parent=63 // pred_fallthru
        _
      // Predicated region
      $region69: #{conv2d_with_gauss3_forward.5} parent=63 // pred_check
        %p694 = pneg %p249
      $region70: #{conv2d_with_gauss3_forward.5} parent=63 // pred_check_branch
        %696 = sbr.rel (%p694) target = $region72
      $region71: #{conv2d_with_gauss3_forward.5} parent=63 // pred_region
        %p697 = scmp.lt.s32.totalorder %s22, 1
        %s698 = scalar_select %p697, %s22, 1
        %s699 = smul.addr %s698, 8
        %s700 = scalar_lea.vmem %s9, %s699
      $region72: #{conv2d_with_gauss3_forward.5} parent=63 // pred_fallthru
        _
    $region64: #{conv2d_with_gauss3_forward.5} parent=5 // pred_fallthru
      _
  $region6: #{conv2d_with_gauss3_forward.5} parent=0 // loop_footer
    %s20 = sadd.s32 1, %s16
  $region7: #{conv2d_with_gauss3_forward.5} parent=0 // loop_footer_branch
    %15 = sbr.rel target = $region3
  $region8: #{conv2d_with_gauss3_forward.5} parent=0 // loop_exit
    _

// kernel: conv2d_with_gauss3_forward.3
$region0: #{conv2d_with_gauss3_forward.3}
  #allocation0 [shape = 'u32[]', space=smem, size = 0x4, offset = 0x4, fixed_abs, tag = 'smem constant byte address 0x4 - core index']
  #allocation1 [shape = 'u32[144,128]{1,0:T(1,128)}', space=vmem, size = 0x12000, scoped, tag = 'internal scratch']
  %s0 = inlined_call_operand.vmem [shape: f32[2,8,384], index: 0, kind: input, shape index: {}]
  %s1 = inlined_call_operand.vmem [shape: bf16[8,72], index: 1, kind: input, shape index: {}]
  %s2 = inlined_call_operand.vmem [shape: f32[1,384], index: 2, kind: input, shape index: {}]
  %s3 = inlined_call_operand.vmem [shape: bf16[2,8,384], index: 3, kind: output, shape index: {0}]
  %s4 = inlined_call_operand.vmem [shape: f32[2,8,2], index: 4, kind: output, shape index: {1}]
  %5 = xla_tuple %s3, %s4
  %s6 = sld [smem:[#allocation0]]
  $region53: #{conv2d_with_gauss3_forward.3} parent=0
    _
  %s8 = ssub.s32 1, %s6
  %s9 = scalar_select 0, %s8, %s6
  loop: start=0, step=1, limit=4
  $region2: #{conv2d_with_gauss3_forward.3} parent=0 // loop_pre_header
    _
  $region3: #{conv2d_with_gauss3_forward.3} parent=0 // loop_header
    %s11 = sphi 0, %s15
    %p12 = scmp.ge.s32.totalorder %s11, 4
    %s21 = sphi 0, %s23
    %s24 = sphi 0, %s21
    %s25 = sphi 0, %s24
    %s41 = sphi 0, %s25
    %s45 = sphi 0, %s45
    %s47 = sphi 0, %s45
    %s48 = sphi 0, %s47
    %s62 = sphi 0, %s48
    %s66 = sphi 0, %s66
    %s68 = sphi 0, %s66
    %s69 = sphi 0, %s68
    %s83 = sphi 0, %s69
    %s89 = sphi 0, %s91
    %s92 = sphi 0, %s89
    %s93 = sphi 0, %s92
    %s109 = sphi 0, %s93
    %s115 = sphi 0, %s117
    %s118 = sphi 0, %s115
    %s119 = sphi 0, %s118
    %s135 = sphi 0, %s119
  $region4: #{conv2d_with_gauss3_forward.3} parent=0 // loop_header_branch
    %14 = sbr.rel (%p12) target = $region8
  $region5: #{conv2d_with_gauss3_forward.3} parent=0 // loop_body
    %s16 = ssub.s32 %s11, 1
    %s17 = ssub.s32 %s11, 2
    %s18 = sadd.s32 %s11, 1
    %s19 = ssub.s32 %s11, %s18
    %p20 = scmp.eq.s32.totalorder %s19, 0
    %s22 = sadd.s32 %s21, 1
    %s23 = scalar_select %p20, %s21, %s22
    %p26 = pneg %p20
    %p27 = scmp.eq.s32.totalorder %s11, 1
    %p28 = por %p26, %p27
    %p29 = scmp.ne.s32.totalorder %s21, %s24
    %p30 = scmp.eq.s32.totalorder %s11, 0
    %p31 = por %p29, %p30
    %p32 = scmp.ne.s32.totalorder %s21, %s24
    %p33 = scmp.eq.s32.totalorder %s16, 1
    %p34 = por %p32, %p33
    %p35 = scmp.ne.s32.totalorder %s24, %s25
    %p36 = scmp.eq.s32.totalorder %s16, 0
    %p37 = por %p35, %p36
    %p38 = scmp.ne.s32.totalorder %s24, %s25
    %p39 = scmp.eq.s32.totalorder %s17, 1
    %p40 = por %p38, %p39
    %p42 = scmp.ne.s32.totalorder %s25, %s41
    %p43 = scmp.eq.s32.totalorder %s17, 0
    %p44 = por %p42, %p43
    %s46 = sadd.s32 %s45, 1
    %p49 = scmp.eq.s32.totalorder %s11, 1
    %p50 = scmp.ne.s32.totalorder %s45, %s47
    %p51 = scmp.eq.s32.totalorder %s11, 0
    %p52 = por %p50, %p51
    %p53 = scmp.ne.s32.totalorder %s45, %s47
    %p54 = scmp.eq.s32.totalorder %s16, 1
    %p55 = por %p53, %p54
    %p56 = scmp.ne.s32.totalorder %s47, %s48
    %p57 = scmp.eq.s32.totalorder %s16, 0
    %p58 = por %p56, %p57
    %p59 = scmp.ne.s32.totalorder %s47, %s48
    %p60 = scmp.eq.s32.totalorder %s17, 1
    %p61 = por %p59, %p60
    %p63 = scmp.ne.s32.totalorder %s48, %s62
    %p64 = scmp.eq.s32.totalorder %s17, 0
    %p65 = por %p63, %p64
    %s67 = sadd.s32 %s66, 1
    %p70 = scmp.eq.s32.totalorder %s11, 1
    %p71 = scmp.ne.s32.totalorder %s66, %s68
    %p72 = scmp.eq.s32.totalorder %s11, 0
    %p73 = por %p71, %p72
    %p74 = scmp.ne.s32.totalorder %s66, %s68
    %p75 = scmp.eq.s32.totalorder %s16, 1
    %p76 = por %p74, %p75
    %p77 = scmp.ne.s32.totalorder %s68, %s69
    %p78 = scmp.eq.s32.totalorder %s16, 0
    %p79 = por %p77, %p78
    %p80 = scmp.ne.s32.totalorder %s68, %s69
    %p81 = scmp.eq.s32.totalorder %s17, 1
    %p82 = por %p80, %p81
    %p84 = scmp.ne.s32.totalorder %s69, %s83
    %p85 = scmp.eq.s32.totalorder %s17, 0
    %p86 = por %p84, %p85
    %s87 = ssub.s32 %s11, %s18
    %p88 = scmp.eq.s32.totalorder %s87, 0
    %s90 = sadd.s32 %s89, 1
    %s91 = scalar_select %p88, %s89, %s90
    %p94 = pneg %p88
    %p95 = scmp.eq.s32.totalorder %s11, 1
    %p96 = por %p94, %p95
    %p97 = scmp.ne.s32.totalorder %s89, %s92
    %p98 = scmp.eq.s32.totalorder %s11, 0
    %p99 = por %p97, %p98
    %p100 = scmp.ne.s32.totalorder %s89, %s92
    %p101 = scmp.eq.s32.totalorder %s16, 1
    %p102 = por %p100, %p101
    %p103 = scmp.ne.s32.totalorder %s92, %s93
    %p104 = scmp.eq.s32.totalorder %s16, 0
    %p105 = por %p103, %p104
    %p106 = scmp.ne.s32.totalorder %s92, %s93
    %p107 = scmp.eq.s32.totalorder %s17, 1
    %p108 = por %p106, %p107
    %p110 = scmp.ne.s32.totalorder %s93, %s109
    %p111 = scmp.eq.s32.totalorder %s17, 0
    %p112 = por %p110, %p111
    %s113 = ssub.s32 %s11, %s18
    %p114 = scmp.eq.s32.totalorder %s113, 0
    %s116 = sadd.s32 %s115, 1
    %s117 = scalar_select %p114, %s115, %s116
    %p120 = pneg %p114
    %p121 = scmp.eq.s32.totalorder %s11, 1
    %p122 = por %p120, %p121
    %p123 = scmp.ne.s32.totalorder %s115, %s118
    %p124 = scmp.eq.s32.totalorder %s11, 0
    %p125 = por %p123, %p124
    %p126 = scmp.ne.s32.totalorder %s115, %s118
    %p127 = scmp.eq.s32.totalorder %s16, 1
    %p128 = por %p126, %p127
    %p129 = scmp.ne.s32.totalorder %s118, %s119
    %p130 = scmp.eq.s32.totalorder %s16, 0
    %p131 = por %p129, %p130
    %p132 = scmp.ne.s32.totalorder %s118, %s119
    %p133 = scmp.eq.s32.totalorder %s17, 1
    %p134 = por %p132, %p133
    %p136 = scmp.ne.s32.totalorder %s119, %s135
    %p137 = scmp.eq.s32.totalorder %s17, 0
    %p138 = por %p136, %p137
    %p139 = scmp.le.s32.totalorder 1, %s11
    %p140 = scmp.lt.s32.totalorder %s11, 3
    %p141 = pnand %p139, %p140
    %p142 = pneg %p141
    // Predicated region
    $region9: #{conv2d_with_gauss3_forward.3} parent=5 // pred_check
      _
    $region10: #{conv2d_with_gauss3_forward.3} parent=5 // pred_check_branch
      %144 = sbr.rel (%p141) target = $region12
    $region11: #{conv2d_with_gauss3_forward.3} parent=5 // pred_region
      %s145 = ssub.s32 %s11, 1
      // Predicated region
      $region13: #{conv2d_with_gauss3_forward.3} parent=11 // pred_check
        %p146 = pneg %p58
      $region14: #{conv2d_with_gauss3_forward.3} parent=11 // pred_check_branch
        %148 = sbr.rel (%p146) target = $region16
      $region15: #{conv2d_with_gauss3_forward.3} parent=11 // pred_region
        _
      $region16: #{conv2d_with_gauss3_forward.3} parent=11 // pred_fallthru
        _
      // Predicated region
      $region17: #{conv2d_with_gauss3_forward.3} parent=11 // pred_check
        %p149 = pneg %p79
      $region18: #{conv2d_with_gauss3_forward.3} parent=11 // pred_check_branch
        %151 = sbr.rel (%p149) target = $region20
      $region19: #{conv2d_with_gauss3_forward.3} parent=11 // pred_region
        _
      $region20: #{conv2d_with_gauss3_forward.3} parent=11 // pred_fallthru
        _
    $region12: #{conv2d_with_gauss3_forward.3} parent=5 // pred_fallthru
      _
    %p152 = scmp.lt.s32.totalorder %s11, 2
    // Predicated region
    $region21: #{conv2d_with_gauss3_forward.3} parent=5 // pred_check
      %p153 = pneg %p152
    $region22: #{conv2d_with_gauss3_forward.3} parent=5 // pred_check_branch
      %155 = sbr.rel (%p153) target = $region24
    $region23: #{conv2d_with_gauss3_forward.3} parent=5 // pred_region
      // Predicated region
      $region25: #{conv2d_with_gauss3_forward.3} parent=23 // pred_check
        %p156 = pneg %p31
      $region26: #{conv2d_with_gauss3_forward.3} parent=23 // pred_check_branch
        %158 = sbr.rel (%p156) target = $region28
      $region27: #{conv2d_with_gauss3_forward.3} parent=23 // pred_region
        %p159 = scmp.lt.s32.totalorder %s11, 1
        %s160 = scalar_select %p159, %s11, 1
        %s161 = smul.addr %s160, 3
        %s162 = smul.addr %s161, 8
        %s163 = scalar_lea.vmem %s0, %s162
      $region28: #{conv2d_with_gauss3_forward.3} parent=23 // pred_fallthru
        _
    $region24: #{conv2d_with_gauss3_forward.3} parent=5 // pred_fallthru
      _
    %p164 = scmp.le.s32.totalorder 1, %s11
    %p165 = scmp.lt.s32.totalorder %s11, 3
    %p166 = pnand %p164, %p165
    %p167 = pneg %p166
    // Predicated region
    $region29: #{conv2d_with_gauss3_forward.3} parent=5 // pred_check
      _
    $region30: #{conv2d_with_gauss3_forward.3} parent=5 // pred_check_branch
      %169 = sbr.rel (%p166) target = $region32
    $region31: #{conv2d_with_gauss3_forward.3} parent=5 // pred_region
      %s170 = ssub.s32 %s11, 1
      %p171 = scmp.lt.s32.totalorder %s16, 1
      %s172 = scalar_select %p171, %s16, 1
      %s173 = smul.addr %s172, 3
      %s174 = smul.addr %s173, 8
      %s175 = scalar_lea.vmem %s0, %s174
      %p176 = pneg %p37
      %p177 = pneg %p34
      %p178 = pneg %p58
      %p179 = pneg %p55
      %p180 = pneg %p79
      %p181 = pneg %p76
      %p182 = pneg %p105
      %p183 = pneg %p102
      %p184 = scmp.lt.s32.totalorder %s16, 1
      %s185 = scalar_select %p184, %s16, 1
      %s186 = smul.addr %s185, 3
      %s187 = smul.addr %s186, 4
      %s188 = scalar_lea.vmem %s3, %s187
      %p189 = pneg %p131
      %p190 = pneg %p128
      %p191 = scmp.lt.s32.totalorder %s16, 1
      %s192 = scalar_select %p191, %s16, 1
      %s193 = smul.addr %s192, 8
      %s194 = scalar_lea.vmem %s4, %s193
      %p195 = scmp.lt.s32.totalorder %s16, 1
      %s196 = scalar_select %p195, %s16, 1
      %s197 = smul.addr %s196, 3
      %s198 = smul.addr %s197, 8
      %s199 = scalar_lea.vmem %s0, %s198
      %p200 = scmp.lt.s32.totalorder %s16, 1
      %s201 = scalar_select %p200, %s16, 1
      %s202 = smul.addr %s201, 3
      %s203 = smul.addr %s202, 4
      %s204 = scalar_lea.vmem %s3, %s203
      %p205 = scmp.lt.s32.totalorder %s16, 1
      %s206 = scalar_select %p205, %s16, 1
      %s207 = smul.addr %s206, 8
      %s208 = scalar_lea.vmem %s4, %s207
      %v210 = vld [vmem:[%s199] sm:$0xff]
      %v211 = vld [vmem:[%s199 + $0x8] sm:$0xff]
      %v212 = vld [vmem:[%s199 + $0x10] sm:$0xff]
      %213 = vrot.lane.b32.xlu0 %v210, 19
      %v214 = vpop.permute.xlu0 %213
      %215 = vrot.lane.b32.xlu0 %v211, 19
      %v216 = vpop.permute.xlu0 %215
      %217 = vrot.lane.b32.xlu0 %v212, 19
      %v218 = vpop.permute.xlu0 %217
      %v219 = vlaneseq
      %v220 = vand.u32 %v219, 127
      %vm221 = vcmp.lt.s32.totalorder %v220, 19
      %v222 = vsel %vm221, %v216, %v218
      %v223 = vsel %vm221, %v214, %v216
      %v224 = vsel %vm221, %v218, %v214
      %225 = vrot.lane.b32.xlu0 %v210, 18
      %v226 = vpop.permute.xlu0 %225
      %227 = vrot.lane.b32.xlu0 %v211, 18
      %v228 = vpop.permute.xlu0 %227
      %229 = vrot.lane.b32.xlu0 %v212, 18
      %v230 = vpop.permute.xlu0 %229
      %vm231 = vcmp.lt.s32.totalorder %v220, 18
      %v232 = vsel %vm231, %v228, %v230
      %v233 = vsel %vm231, %v226, %v228
      %v234 = vsel %vm231, %v230, %v226
      %235 = vrot.lane.b32.xlu0 %v210, 17
      %v236 = vpop.permute.xlu0 %235
      %237 = vrot.lane.b32.xlu0 %v211, 17
      %v238 = vpop.permute.xlu0 %237
      %239 = vrot.lane.b32.xlu0 %v212, 17
      %v240 = vpop.permute.xlu0 %239
      %vm241 = vcmp.lt.s32.totalorder %v220, 17
      %v242 = vsel %vm241, %v238, %v240
      %v243 = vsel %vm241, %v236, %v238
      %v244 = vsel %vm241, %v240, %v236
      %245 = vrot.lane.b32.xlu0 %v210, 1
      %v246 = vpop.permute.xlu0 %245
      %247 = vrot.lane.b32.xlu0 %v211, 1
      %v248 = vpop.permute.xlu0 %247
      %249 = vrot.lane.b32.xlu0 %v212, 1
      %v250 = vpop.permute.xlu0 %249
      %vm251 = vcmp.lt.s32.totalorder %v220, 1
      %v252 = vsel %vm251, %v248, %v250
      %v253 = vsel %vm251, %v246, %v248
      %v254 = vsel %vm251, %v250, %v246
      %255 = vrot.lane.b32.xlu0 %v210, 127
      %v256 = vpop.permute.xlu0 %255
      %257 = vrot.lane.b32.xlu0 %v211, 127
      %v258 = vpop.permute.xlu0 %257
      %259 = vrot.lane.b32.xlu0 %v212, 127
      %v260 = vpop.permute.xlu0 %259
      %vm261 = vcmp.lt.s32.totalorder %v220, 127
      %v262 = vsel %vm261, %v258, %v260
      %v263 = vsel %vm261, %v256, %v258
      %v264 = vsel %vm261, %v260, %v256
      %265 = vrot.lane.b32.xlu0 %v210, 111
      %v266 = vpop.permute.xlu0 %265
      %267 = vrot.lane.b32.xlu0 %v211, 111
      %v268 = vpop.permute.xlu0 %267
      %269 = vrot.lane.b32.xlu0 %v212, 111
      %v270 = vpop.permute.xlu0 %269
      %vm271 = vcmp.lt.s32.totalorder %v220, 111
      %v272 = vsel %vm271, %v268, %v270
      %v273 = vsel %vm271, %v266, %v268
      %v274 = vsel %vm271, %v270, %v266
      %275 = vrot.lane.b32.xlu0 %v210, 110
      %v276 = vpop.permute.xlu0 %275
      %277 = vrot.lane.b32.xlu0 %v211, 110
      %v278 = vpop.permute.xlu0 %277
      %279 = vrot.lane.b32.xlu0 %v212, 110
      %v280 = vpop.permute.xlu0 %279
      %vm281 = vcmp.lt.s32.totalorder %v220, 110
      %v282 = vsel %vm281, %v278, %v280
      %v283 = vsel %vm281, %v276, %v278
      %v284 = vsel %vm281, %v280, %v276
      %285 = vrot.lane.b32.xlu0 %v210, 109
      %v286 = vpop.permute.xlu0 %285
      %287 = vrot.lane.b32.xlu0 %v211, 109
      %v288 = vpop.permute.xlu0 %287
      %289 = vrot.lane.b32.xlu0 %v212, 109
      %v290 = vpop.permute.xlu0 %289
      %vm291 = vcmp.lt.s32.totalorder %v220, 109
      %v292 = vsel %vm291, %v288, %v290
      %v293 = vsel %vm291, %v286, %v288
      %v294 = vsel %vm291, %v290, %v286
      %v295 = vpack.c.bf16 %v234, %v224
      %v296 = vpack.c.bf16 %v233, %v223
      %v297 = vpack.c.bf16 %v232, %v222
      %v298 = vpack.c.bf16 %v254, %v244
      %v299 = vpack.c.bf16 %v253, %v243
      %v300 = vpack.c.bf16 %v252, %v242
      %v301 = vpack.c.bf16 %v263, %v210
      %v302 = vpack.c.bf16 %v262, %v211
      %v303 = vpack.c.bf16 %v264, %v212
      %v304 = vpack.c.bf16 %v283, %v273
      %v305 = vpack.c.bf16 %v282, %v272
      %v306 = vpack.c.bf16 %v284, %v274
      %v307 = vpack.c.bf16 %v293, %v293
      %v308 = vpack.c.bf16 %v292, %v292
      %v309 = vpack.c.bf16 %v294, %v294
      %v310 = vld [vmem:[%s1] sm:$0xf]
      %vm311 = vcmask 588800
      %v313 = vsel %vm311, %v310, 0
      %vm315 = vcmask 1043456
      %v317 = vsel %vm315, %v307, 0
      %v320 = vsel %vm315, %v308, 0
      %v323 = vsel %vm315, %v309, 0
      %325 = vmatprep.subr.bf16.mxu0 %v296
      %326 = vmatpush1.bf16.msra.mxu0 %v295
      %327 = vmatprep.subr.bf16.mxu0 %v299
      %328 = vmatpush1.bf16.msra.mxu0 %v298
      %329 = vmatprep.subr.bf16.mxu0 %v302
      %330 = vmatpush1.bf16.msra.mxu0 %v301
      %331 = vmatprep.subr.bf16.mxu0 %v305
      %332 = vmatpush1.bf16.msra.mxu0 %v304
      %333 = vmatprep.subr.bf16.mxu0 %v320
      %334 = vmatpush1.bf16.msra.mxu0 %v317
      %335 = vmatprep.subr.bf16.mxu0 0
      %336 = vmatpush1.bf16.msra.mxu0 0
      %337 = vmatprep.subr.bf16.mxu0 0
      %338 = vmatpush1.bf16.msra.mxu0 0
      %339 = vmatprep.subr.bf16.mxu0 0
      %340 = vmatpush1.bf16.msra.mxu0 0
      %341 = vmatprep.subr.bf16.mxu0 0
      %342 = vmatpush1.bf16.msra.mxu0 0
      %343 = vmatprep.subr.bf16.mxu0 0
      %344 = vmatpush1.bf16.msra.mxu0 0
      %345 = vmatprep.subr.bf16.mxu0 0
      %346 = vmatpush1.bf16.msra.mxu0 0
      %347 = vmatprep.subr.bf16.mxu0 0
      %348 = vmatpush1.bf16.msra.mxu0 0
      %349 = vmatprep.subr.bf16.mxu0 0
      %350 = vmatpush1.bf16.msra.mxu0 0
      %351 = vmatprep.subr.bf16.mxu0 0
      %352 = vmatpush1.bf16.msra.mxu0 0
      %353 = vmatprep.subr.bf16.mxu0 0
      %354 = vmatpush1.bf16.msra.mxu0 0
      %355 = vmatprep.subr.bf16.mxu0 0
      %356 = vmatpush1.bf16.msra.mxu0 0
      %357 = vmatprep.mubr.bf16.mxu0 0
      %358 = vmatmul.mubr.bf16.gmra.mrb[0].mxu0 %v313
      %v359 = vpop.f32.mrb[0].mxu0
      %v360 = vadd.f32 0.0, %v359
      %v361 = vpop.f32.mrb[0].mxu0
      %v362 = vadd.f32 0.0, %v361
      %v363 = vpop.f32.mrb[0].mxu0
      %v364 = vpop.f32.mrb[0].mxu0
      %365 = vdwg.mxu0
      %366 = vmatprep.subr.bf16.mxu0 0
      %367 = vmatpush1.bf16.msra.mxu0 %v297
      %368 = vmatprep.subr.bf16.mxu0 0
      %369 = vmatpush1.bf16.msra.mxu0 %v300
      %370 = vmatprep.subr.bf16.mxu0 0
      %371 = vmatpush1.bf16.msra.mxu0 %v303
      %372 = vmatprep.subr.bf16.mxu0 0
      %373 = vmatpush1.bf16.msra.mxu0 %v306
      %374 = vmatprep.subr.bf16.mxu0 0
      %375 = vmatpush1.bf16.msra.mxu0 %v323
      %376 = vmatprep.subr.bf16.mxu0 0
      %377 = vmatpush1.bf16.msra.mxu0 0
      %378 = vmatprep.subr.bf16.mxu0 0
      %379 = vmatpush1.bf16.msra.mxu0 0
      %380 = vmatprep.subr.bf16.mxu0 0
      %381 = vmatpush1.bf16.msra.mxu0 0
      %382 = vmatprep.subr.bf16.mxu0 0
      %383 = vmatpush1.bf16.msra.mxu0 0
      %384 = vmatprep.subr.bf16.mxu0 0
      %385 = vmatpush1.bf16.msra.mxu0 0
      %386 = vmatprep.subr.bf16.mxu0 0
      %387 = vmatpush1.bf16.msra.mxu0 0
      %388 = vmatprep.subr.bf16.mxu0 0
      %389 = vmatpush1.bf16.msra.mxu0 0
      %390 = vmatprep.subr.bf16.mxu0 0
      %391 = vmatpush1.bf16.msra.mxu0 0
      %392 = vmatprep.subr.bf16.mxu0 0
      %393 = vmatpush1.bf16.msra.mxu0 0
      %394 = vmatprep.subr.bf16.mxu0 0
      %395 = vmatpush1.bf16.msra.mxu0 0
      %396 = vmatprep.subr.bf16.mxu0 0
      %397 = vmatpush1.bf16.msra.mxu0 0
      %398 = vmatprep.mubr.bf16.mxu0 0
      %399 = vmatmul.mubr.bf16.gmra.mrb[0].mxu0 %v313
      %v400 = vpop.f32.mrb[0].mxu0
      %v401 = vadd.f32 0.0, %v400
      %v402 = vpop.f32.mrb[0].mxu0
      %v403 = vpop.f32.mrb[0].mxu0
      %v404 = vpop.f32.mrb[0].mxu0
      %405 = vdwg.mxu0
      %v406 = vld [vmem:[%s2] sm:$0x7]
      %v408 = vlaneseq
      %v409 = vshrl.u32 %v408, 7
      %v410 = vsub.s32 0, %v409
      %v411 = vrot.slane %v406, %v410
      %v412 = vlaneseq
      %v413 = vshrl.u32 %v412, 7
      %v414 = vsub.s32 1, %v413
      %v415 = vrot.slane %v406, %v414
      %v416 = vlaneseq
      %v417 = vshrl.u32 %v416, 7
      %v418 = vsub.s32 2, %v417
      %v419 = vrot.slane %v406, %v418
      %v423 = vmul.f32 %v360, %v411
      %v424 = vmul.f32 %v362, %v415
      %v425 = vmul.f32 %v401, %v419
      %v426 = vpack.c.bf16 %v423, %v423
      %v427 = vpack.c.bf16 %v424, %v424
      %v428 = vpack.c.bf16 %v425, %v425
      %v432 = vunpack.c.l.b16 %v426
      %v433 = vunpack.c.l.b16 %v427
      %v434 = vunpack.c.l.b16 %v428
      %v435 = vpack.c.b16 %v433, %v432
      %v436 = vpack.c.b16 %v434, %v434
      %439 = vst [vmem:[%s204] sm:$0xff] %v435
      %440 = vst [vmem:[%s204 + $0x8] sm:$0xf] %v436
      %v441 = vadd.f32 %v423, %v424
      %v442 = vadd.f32 %v441, %v425
      %443 = vadd.xlane.f32.xlu0 %v442
      %v444 = vpop.xlane.xlu0 %443
      %v445 = vmul.f32 %v423, %v423
      %v446 = vmul.f32 %v424, %v424
      %v447 = vmul.f32 %v425, %v425
      %v448 = vadd.f32 %v445, %v446
      %v449 = vadd.f32 %v448, %v447
      %450 = vadd.xlane.f32.xlu0 %v449
      %v451 = vpop.xlane.xlu0 %450
      %vm452 = vcmask 7168
      %v453 = vsel %vm452, %v444, %v451
      %vm454 = vcmask 15360
      %455 = vst.msk [vmem:[%s208] sm:$0xff] %vm454, %v453
      %p456 = scmp.lt.s32.totalorder %s16, 1
      %s457 = scalar_select %p456, %s16, 1
      %s458 = smul.addr %s457, 3
      %s459 = smul.addr %s458, 4
      %s460 = scalar_lea.vmem %s3, %s459
      %p461 = scmp.lt.s32.totalorder %s16, 1
      %s462 = scalar_select %p461, %s16, 1
      %s463 = smul.addr %s462, 8
      %s464 = scalar_lea.vmem %s4, %s463
      // Predicated region
      $region33: #{conv2d_with_gauss3_forward.3} parent=31 // pred_check
        %p465 = pneg %p102
      $region34: #{conv2d_with_gauss3_forward.3} parent=31 // pred_check_branch
        %467 = sbr.rel (%p465) target = $region36
      $region35: #{conv2d_with_gauss3_forward.3} parent=31 // pred_region
        _
      $region36: #{conv2d_with_gauss3_forward.3} parent=31 // pred_fallthru
        _
      // Predicated region
      $region37: #{conv2d_with_gauss3_forward.3} parent=31 // pred_check
        %p468 = pneg %p128
      $region38: #{conv2d_with_gauss3_forward.3} parent=31 // pred_check_branch
        %470 = sbr.rel (%p468) target = $region40
      $region39: #{conv2d_with_gauss3_forward.3} parent=31 // pred_region
        _
      $region40: #{conv2d_with_gauss3_forward.3} parent=31 // pred_fallthru
        _
    $region32: #{conv2d_with_gauss3_forward.3} parent=5 // pred_fallthru
      _
    %p471 = scmp.le.s32.totalorder 2, %s11
    // Predicated region
    $region41: #{conv2d_with_gauss3_forward.3} parent=5 // pred_check
      %p472 = pneg %p471
    $region42: #{conv2d_with_gauss3_forward.3} parent=5 // pred_check_branch
      %474 = sbr.rel (%p472) target = $region44
    $region43: #{conv2d_with_gauss3_forward.3} parent=5 // pred_region
      %s475 = ssub.s32 %s11, 2
      // Predicated region
      $region45: #{conv2d_with_gauss3_forward.3} parent=43 // pred_check
        %p476 = pneg %p108
      $region46: #{conv2d_with_gauss3_forward.3} parent=43 // pred_check_branch
        %478 = sbr.rel (%p476) target = $region48
      $region47: #{conv2d_with_gauss3_forward.3} parent=43 // pred_region
        %p479 = scmp.lt.s32.totalorder %s17, 1
        %s480 = scalar_select %p479, %s17, 1
        %s481 = smul.addr %s480, 3
        %s482 = smul.addr %s481, 4
        %s483 = scalar_lea.vmem %s3, %s482
      $region48: #{conv2d_with_gauss3_forward.3} parent=43 // pred_fallthru
        _
      // Predicated region
      $region49: #{conv2d_with_gauss3_forward.3} parent=43 // pred_check
        %p484 = pneg %p134
      $region50: #{conv2d_with_gauss3_forward.3} parent=43 // pred_check_branch
        %486 = sbr.rel (%p484) target = $region52
      $region51: #{conv2d_with_gauss3_forward.3} parent=43 // pred_region
        %p487 = scmp.lt.s32.totalorder %s17, 1
        %s488 = scalar_select %p487, %s17, 1
        %s489 = smul.addr %s488, 8
        %s490 = scalar_lea.vmem %s4, %s489
      $region52: #{conv2d_with_gauss3_forward.3} parent=43 // pred_fallthru
        _
    $region44: #{conv2d_with_gauss3_forward.3} parent=5 // pred_fallthru
      _
  $region6: #{conv2d_with_gauss3_forward.3} parent=0 // loop_footer
    %s15 = sadd.s32 1, %s11
  $region7: #{conv2d_with_gauss3_forward.3} parent=0 // loop_footer_branch
    %10 = sbr.rel target = $region3
  $region8: #{conv2d_with_gauss3_forward.3} parent=0 // loop_exit
    _

// kernel: conv2d_with_gauss3_forward.4
$region0: #{conv2d_with_gauss3_forward.4}
  #allocation0 [shape = 'u32[]', space=smem, size = 0x4, offset = 0x4, fixed_abs, tag = 'smem constant byte address 0x4 - core index']
  #allocation1 [shape = 'u32[144,128]{1,0:T(1,128)}', space=vmem, size = 0x12000, scoped, tag = 'internal scratch']
  %s0 = inlined_call_operand.vmem [shape: bf16[2,8,384], index: 0, kind: input, shape index: {}]
  %s1 = inlined_call_operand.vmem [shape: f32[8,1], index: 1, kind: input, shape index: {}]
  %s2 = inlined_call_operand.vmem [shape: f32[8,1], index: 2, kind: input, shape index: {}]
  %s3 = inlined_call_operand.vmem [shape: f32[9], index: 3, kind: input, shape index: {}]
  %s4 = inlined_call_operand.vmem [shape: bf16[8,72], index: 4, kind: input, shape index: {}]
  %s5 = inlined_call_operand.vmem [shape: bf16[8,72], index: 5, kind: input, shape index: {}]
  %s6 = inlined_call_operand.vmem [shape: f32[1,384], index: 6, kind: input, shape index: {}]
  %s7 = inlined_call_operand.vmem [shape: bf16[2,8,384], index: 7, kind: output, shape index: {0}]
  %s8 = inlined_call_operand.vmem [shape: f32[2,8,2], index: 8, kind: output, shape index: {1}]
  %9 = xla_tuple %s7, %s8
  %s10 = sld [smem:[#allocation0]]
  $region73: #{conv2d_with_gauss3_forward.4} parent=0
    _
  %s12 = ssub.s32 1, %s10
  %s13 = scalar_select 0, %s12, %s10
  $region1: #{conv2d_with_gauss3_forward.4} parent=0
    #allocation2 [shape = 'u8[512]{0}', space=smem, size = 0x200, scoped, tag = 'input window, operand 3, single buffered']
    #allocation3 [shape = 's32[2]{0}', space=sflag, size = 0x8, scoped, tag = 'scoped memory for conv2d_with_gauss3_forward.4']
    %14 = vsyncpa [#allocation3], 0
    loop: start=0, step=1, limit=4
    $region2: #{conv2d_with_gauss3_forward.4} parent=1 // loop_pre_header
      _
    $region3: #{conv2d_with_gauss3_forward.4} parent=1 // loop_header
      %s16 = sphi 0, %s20
      %p17 = scmp.ge.s32.totalorder %s16, 4
      %s26 = sphi 0, %s28
      %s29 = sphi 0, %s26
      %s30 = sphi 0, %s29
      %s46 = sphi 0, %s30
      %s50 = sphi 0, %s50
      %s52 = sphi 0, %s50
      %s53 = sphi 0, %s52
      %s67 = sphi 0, %s53
      %s71 = sphi 0, %s71
      %s73 = sphi 0, %s71
      %s74 = sphi 0, %s73
      %s88 = sphi 0, %s74
      %s92 = sphi 0, %s92
      %s94 = sphi 0, %s92
      %s95 = sphi 0, %s94
      %s109 = sphi 0, %s95
      %s113 = sphi 0, %s113
      %s115 = sphi 0, %s113
      %s116 = sphi 0, %s115
      %s130 = sphi 0, %s116
      %s134 = sphi 0, %s134
      %s136 = sphi 0, %s134
      %s137 = sphi 0, %s136
      %s151 = sphi 0, %s137
      %s155 = sphi 0, %s155
      %s157 = sphi 0, %s155
      %s158 = sphi 0, %s157
      %s172 = sphi 0, %s158
      %s178 = sphi 0, %s180
      %s181 = sphi 0, %s178
      %s182 = sphi 0, %s181
      %s198 = sphi 0, %s182
      %s204 = sphi 0, %s206
      %s207 = sphi 0, %s204
      %s208 = sphi 0, %s207
      %s224 = sphi 0, %s208
    $region4: #{conv2d_with_gauss3_forward.4} parent=1 // loop_header_branch
      %19 = sbr.rel (%p17) target = $region8
    $region5: #{conv2d_with_gauss3_forward.4} parent=1 // loop_body
      %s21 = ssub.s32 %s16, 1
      %s22 = ssub.s32 %s16, 2
      %s23 = sadd.s32 %s16, 1
      %s24 = ssub.s32 %s16, %s23
      %p25 = scmp.eq.s32.totalorder %s24, 0
      %s27 = sadd.s32 %s26, 1
      %s28 = scalar_select %p25, %s26, %s27
      %p31 = pneg %p25
      %p32 = scmp.eq.s32.totalorder %s16, 1
      %p33 = por %p31, %p32
      %p34 = scmp.ne.s32.totalorder %s26, %s29
      %p35 = scmp.eq.s32.totalorder %s16, 0
      %p36 = por %p34, %p35
      %p37 = scmp.ne.s32.totalorder %s26, %s29
      %p38 = scmp.eq.s32.totalorder %s21, 1
      %p39 = por %p37, %p38
      %p40 = scmp.ne.s32.totalorder %s29, %s30
      %p41 = scmp.eq.s32.totalorder %s21, 0
      %p42 = por %p40, %p41
      %p43 = scmp.ne.s32.totalorder %s29, %s30
      %p44 = scmp.eq.s32.totalorder %s22, 1
      %p45 = por %p43, %p44
      %p47 = scmp.ne.s32.totalorder %s30, %s46
      %p48 = scmp.eq.s32.totalorder %s22, 0
      %p49 = por %p47, %p48
      %s51 = sadd.s32 %s50, 1
      %p54 = scmp.eq.s32.totalorder %s16, 1
      %p55 = scmp.ne.s32.totalorder %s50, %s52
      %p56 = scmp.eq.s32.totalorder %s16, 0
      %p57 = por %p55, %p56
      %p58 = scmp.ne.s32.totalorder %s50, %s52
      %p59 = scmp.eq.s32.totalorder %s21, 1
      %p60 = por %p58, %p59
      %p61 = scmp.ne.s32.totalorder %s52, %s53
      %p62 = scmp.eq.s32.totalorder %s21, 0
      %p63 = por %p61, %p62
      %p64 = scmp.ne.s32.totalorder %s52, %s53
      %p65 = scmp.eq.s32.totalorder %s22, 1
      %p66 = por %p64, %p65
      %p68 = scmp.ne.s32.totalorder %s53, %s67
      %p69 = scmp.eq.s32.totalorder %s22, 0
      %p70 = por %p68, %p69
      %s72 = sadd.s32 %s71, 1
      %p75 = scmp.eq.s32.totalorder %s16, 1
      %p76 = scmp.ne.s32.totalorder %s71, %s73
      %p77 = scmp.eq.s32.totalorder %s16, 0
      %p78 = por %p76, %p77
      %p79 = scmp.ne.s32.totalorder %s71, %s73
      %p80 = scmp.eq.s32.totalorder %s21, 1
      %p81 = por %p79, %p80
      %p82 = scmp.ne.s32.totalorder %s73, %s74
      %p83 = scmp.eq.s32.totalorder %s21, 0
      %p84 = por %p82, %p83
      %p85 = scmp.ne.s32.totalorder %s73, %s74
      %p86 = scmp.eq.s32.totalorder %s22, 1
      %p87 = por %p85, %p86
      %p89 = scmp.ne.s32.totalorder %s74, %s88
      %p90 = scmp.eq.s32.totalorder %s22, 0
      %p91 = por %p89, %p90
      %s93 = sadd.s32 %s92, 1
      %p96 = scmp.eq.s32.totalorder %s16, 1
      %p97 = scmp.ne.s32.totalorder %s92, %s94
      %p98 = scmp.eq.s32.totalorder %s16, 0
      %p99 = por %p97, %p98
      %p100 = scmp.ne.s32.totalorder %s92, %s94
      %p101 = scmp.eq.s32.totalorder %s21, 1
      %p102 = por %p100, %p101
      %p103 = scmp.ne.s32.totalorder %s94, %s95
      %p104 = scmp.eq.s32.totalorder %s21, 0
      %p105 = por %p103, %p104
      %p106 = scmp.ne.s32.totalorder %s94, %s95
      %p107 = scmp.eq.s32.totalorder %s22, 1
      %p108 = por %p106, %p107
      %p110 = scmp.ne.s32.totalorder %s95, %s109
      %p111 = scmp.eq.s32.totalorder %s22, 0
      %p112 = por %p110, %p111
      %s114 = sadd.s32 %s113, 1
      %p117 = scmp.eq.s32.totalorder %s16, 1
      %p118 = scmp.ne.s32.totalorder %s113, %s115
      %p119 = scmp.eq.s32.totalorder %s16, 0
      %p120 = por %p118, %p119
      %p121 = scmp.ne.s32.totalorder %s113, %s115
      %p122 = scmp.eq.s32.totalorder %s21, 1
      %p123 = por %p121, %p122
      %p124 = scmp.ne.s32.totalorder %s115, %s116
      %p125 = scmp.eq.s32.totalorder %s21, 0
      %p126 = por %p124, %p125
      %p127 = scmp.ne.s32.totalorder %s115, %s116
      %p128 = scmp.eq.s32.totalorder %s22, 1
      %p129 = por %p127, %p128
      %p131 = scmp.ne.s32.totalorder %s116, %s130
      %p132 = scmp.eq.s32.totalorder %s22, 0
      %p133 = por %p131, %p132
      %s135 = sadd.s32 %s134, 1
      %p138 = scmp.eq.s32.totalorder %s16, 1
      %p139 = scmp.ne.s32.totalorder %s134, %s136
      %p140 = scmp.eq.s32.totalorder %s16, 0
      %p141 = por %p139, %p140
      %p142 = scmp.ne.s32.totalorder %s134, %s136
      %p143 = scmp.eq.s32.totalorder %s21, 1
      %p144 = por %p142, %p143
      %p145 = scmp.ne.s32.totalorder %s136, %s137
      %p146 = scmp.eq.s32.totalorder %s21, 0
      %p147 = por %p145, %p146
      %p148 = scmp.ne.s32.totalorder %s136, %s137
      %p149 = scmp.eq.s32.totalorder %s22, 1
      %p150 = por %p148, %p149
      %p152 = scmp.ne.s32.totalorder %s137, %s151
      %p153 = scmp.eq.s32.totalorder %s22, 0
      %p154 = por %p152, %p153
      %s156 = sadd.s32 %s155, 1
      %p159 = scmp.eq.s32.totalorder %s16, 1
      %p160 = scmp.ne.s32.totalorder %s155, %s157
      %p161 = scmp.eq.s32.totalorder %s16, 0
      %p162 = por %p160, %p161
      %p163 = scmp.ne.s32.totalorder %s155, %s157
      %p164 = scmp.eq.s32.totalorder %s21, 1
      %p165 = por %p163, %p164
      %p166 = scmp.ne.s32.totalorder %s157, %s158
      %p167 = scmp.eq.s32.totalorder %s21, 0
      %p168 = por %p166, %p167
      %p169 = scmp.ne.s32.totalorder %s157, %s158
      %p170 = scmp.eq.s32.totalorder %s22, 1
      %p171 = por %p169, %p170
      %p173 = scmp.ne.s32.totalorder %s158, %s172
      %p174 = scmp.eq.s32.totalorder %s22, 0
      %p175 = por %p173, %p174
      %s176 = ssub.s32 %s16, %s23
      %p177 = scmp.eq.s32.totalorder %s176, 0
      %s179 = sadd.s32 %s178, 1
      %s180 = scalar_select %p177, %s178, %s179
      %p183 = pneg %p177
      %p184 = scmp.eq.s32.totalorder %s16, 1
      %p185 = por %p183, %p184
      %p186 = scmp.ne.s32.totalorder %s178, %s181
      %p187 = scmp.eq.s32.totalorder %s16, 0
      %p188 = por %p186, %p187
      %p189 = scmp.ne.s32.totalorder %s178, %s181
      %p190 = scmp.eq.s32.totalorder %s21, 1
      %p191 = por %p189, %p190
      %p192 = scmp.ne.s32.totalorder %s181, %s182
      %p193 = scmp.eq.s32.totalorder %s21, 0
      %p194 = por %p192, %p193
      %p195 = scmp.ne.s32.totalorder %s181, %s182
      %p196 = scmp.eq.s32.totalorder %s22, 1
      %p197 = por %p195, %p196
      %p199 = scmp.ne.s32.totalorder %s182, %s198
      %p200 = scmp.eq.s32.totalorder %s22, 0
      %p201 = por %p199, %p200
      %s202 = ssub.s32 %s16, %s23
      %p203 = scmp.eq.s32.totalorder %s202, 0
      %s205 = sadd.s32 %s204, 1
      %s206 = scalar_select %p203, %s204, %s205
      %p209 = pneg %p203
      %p210 = scmp.eq.s32.totalorder %s16, 1
      %p211 = por %p209, %p210
      %p212 = scmp.ne.s32.totalorder %s204, %s207
      %p213 = scmp.eq.s32.totalorder %s16, 0
      %p214 = por %p212, %p213
      %p215 = scmp.ne.s32.totalorder %s204, %s207
      %p216 = scmp.eq.s32.totalorder %s21, 1
      %p217 = por %p215, %p216
      %p218 = scmp.ne.s32.totalorder %s207, %s208
      %p219 = scmp.eq.s32.totalorder %s21, 0
      %p220 = por %p218, %p219
      %p221 = scmp.ne.s32.totalorder %s207, %s208
      %p222 = scmp.eq.s32.totalorder %s22, 1
      %p223 = por %p221, %p222
      %p225 = scmp.ne.s32.totalorder %s208, %s224
      %p226 = scmp.eq.s32.totalorder %s22, 0
      %p227 = por %p225, %p226
      %p228 = scmp.le.s32.totalorder 1, %s16
      %p229 = scmp.lt.s32.totalorder %s16, 3
      %p230 = pnand %p228, %p229
      %p231 = pneg %p230
      // Predicated region
      $region9: #{conv2d_with_gauss3_forward.4} parent=5 // pred_check
        _
      $region10: #{conv2d_with_gauss3_forward.4} parent=5 // pred_check_branch
        %233 = sbr.rel (%p230) target = $region12
      $region11: #{conv2d_with_gauss3_forward.4} parent=5 // pred_region
        %s234 = ssub.s32 %s16, 1
        // Predicated region
        $region13: #{conv2d_with_gauss3_forward.4} parent=11 // pred_check
          %p235 = pneg %p63
        $region14: #{conv2d_with_gauss3_forward.4} parent=11 // pred_check_branch
          %237 = sbr.rel (%p235) target = $region16
        $region15: #{conv2d_with_gauss3_forward.4} parent=11 // pred_region
          _
        $region16: #{conv2d_with_gauss3_forward.4} parent=11 // pred_fallthru
          _
        // Predicated region
        $region17: #{conv2d_with_gauss3_forward.4} parent=11 // pred_check
          %p238 = pneg %p84
        $region18: #{conv2d_with_gauss3_forward.4} parent=11 // pred_check_branch
          %240 = sbr.rel (%p238) target = $region20
        $region19: #{conv2d_with_gauss3_forward.4} parent=11 // pred_region
          _
        $region20: #{conv2d_with_gauss3_forward.4} parent=11 // pred_fallthru
          _
        // Predicated region
        $region21: #{conv2d_with_gauss3_forward.4} parent=11 // pred_check
          %p241 = pneg %p105
        $region22: #{conv2d_with_gauss3_forward.4} parent=11 // pred_check_branch
          %243 = sbr.rel (%p241) target = $region24
        $region23: #{conv2d_with_gauss3_forward.4} parent=11 // pred_region
          %s245 = ssub.s32 16, 16
          %246 = vsyncadd [#allocation3], %s245
          %s248 = sshll.u32 %s3, 4
          %s249 = int_to_ptr.vmem [resolvable:$true] %s248
          %251 = dma.vmem_to_smem %s249, 16, [#allocation2], [#allocation3]
        $region24: #{conv2d_with_gauss3_forward.4} parent=11 // pred_fallthru
          _
        // Predicated region
        $region25: #{conv2d_with_gauss3_forward.4} parent=11 // pred_check
          %p252 = pneg %p126
        $region26: #{conv2d_with_gauss3_forward.4} parent=11 // pred_check_branch
          %254 = sbr.rel (%p252) target = $region28
        $region27: #{conv2d_with_gauss3_forward.4} parent=11 // pred_region
          _
        $region28: #{conv2d_with_gauss3_forward.4} parent=11 // pred_fallthru
          _
        // Predicated region
        $region29: #{conv2d_with_gauss3_forward.4} parent=11 // pred_check
          %p255 = pneg %p147
        $region30: #{conv2d_with_gauss3_forward.4} parent=11 // pred_check_branch
          %257 = sbr.rel (%p255) target = $region32
        $region31: #{conv2d_with_gauss3_forward.4} parent=11 // pred_region
          _
        $region32: #{conv2d_with_gauss3_forward.4} parent=11 // pred_fallthru
          _
        // Predicated region
        $region33: #{conv2d_with_gauss3_forward.4} parent=11 // pred_check
          %p258 = pneg %p168
        $region34: #{conv2d_with_gauss3_forward.4} parent=11 // pred_check_branch
          %260 = sbr.rel (%p258) target = $region36
        $region35: #{conv2d_with_gauss3_forward.4} parent=11 // pred_region
          _
        $region36: #{conv2d_with_gauss3_forward.4} parent=11 // pred_fallthru
          _
      $region12: #{conv2d_with_gauss3_forward.4} parent=5 // pred_fallthru
        _
      %p261 = scmp.lt.s32.totalorder %s16, 2
      // Predicated region
      $region37: #{conv2d_with_gauss3_forward.4} parent=5 // pred_check
        %p262 = pneg %p261
      $region38: #{conv2d_with_gauss3_forward.4} parent=5 // pred_check_branch
        %264 = sbr.rel (%p262) target = $region40
      $region39: #{conv2d_with_gauss3_forward.4} parent=5 // pred_region
        // Predicated region
        $region41: #{conv2d_with_gauss3_forward.4} parent=39 // pred_check
          %p265 = pneg %p36
        $region42: #{conv2d_with_gauss3_forward.4} parent=39 // pred_check_branch
          %267 = sbr.rel (%p265) target = $region44
        $region43: #{conv2d_with_gauss3_forward.4} parent=39 // pred_region
          %p268 = scmp.lt.s32.totalorder %s16, 1
          %s269 = scalar_select %p268, %s16, 1
          %s270 = smul.addr %s269, 3
          %s271 = smul.addr %s270, 4
          %s272 = scalar_lea.vmem %s0, %s271
        $region44: #{conv2d_with_gauss3_forward.4} parent=39 // pred_fallthru
          _
      $region40: #{conv2d_with_gauss3_forward.4} parent=5 // pred_fallthru
        _
      %p273 = scmp.le.s32.totalorder 1, %s16
      %p274 = scmp.lt.s32.totalorder %s16, 3
      %p275 = pnand %p273, %p274
      %p276 = pneg %p275
      // Predicated region
      $region45: #{conv2d_with_gauss3_forward.4} parent=5 // pred_check
        _
      $region46: #{conv2d_with_gauss3_forward.4} parent=5 // pred_check_branch
        %278 = sbr.rel (%p275) target = $region48
      $region47: #{conv2d_with_gauss3_forward.4} parent=5 // pred_region
        %s279 = ssub.s32 %s16, 1
        // Predicated region
        $region49: #{conv2d_with_gauss3_forward.4} parent=47 // pred_check
          %p280 = pneg %p105
        $region50: #{conv2d_with_gauss3_forward.4} parent=47 // pred_check_branch
          %282 = sbr.rel (%p280) target = $region52
        $region51: #{conv2d_with_gauss3_forward.4} parent=47 // pred_region
          %283 = dma.done [#allocation3], 16
        $region52: #{conv2d_with_gauss3_forward.4} parent=47 // pred_fallthru
          _
        %284 = sfence
        %p285 = scmp.lt.s32.totalorder %s21, 1
        %s286 = scalar_select %p285, %s21, 1
        %s287 = smul.addr %s286, 3
        %s288 = smul.addr %s287, 4
        %s289 = scalar_lea.vmem %s0, %s288
        %p290 = pneg %p42
        %p291 = pneg %p39
        %p292 = pneg %p63
        %p293 = pneg %p60
        %p294 = pneg %p84
        %p295 = pneg %p81
        %p296 = pneg %p105
        %p297 = pneg %p102
        %p298 = pneg %p126
        %p299 = pneg %p123
        %p300 = pneg %p147
        %p301 = pneg %p144
        %p302 = pneg %p168
        %p303 = pneg %p165
        %p304 = pneg %p194
        %p305 = pneg %p191
        %p306 = scmp.lt.s32.totalorder %s21, 1
        %s307 = scalar_select %p306, %s21, 1
        %s308 = smul.addr %s307, 3
        %s309 = smul.addr %s308, 4
        %s310 = scalar_lea.vmem %s7, %s309
        %p311 = pneg %p220
        %p312 = pneg %p217
        %p313 = scmp.lt.s32.totalorder %s21, 1
        %s314 = scalar_select %p313, %s21, 1
        %s315 = smul.addr %s314, 8
        %s316 = scalar_lea.vmem %s8, %s315
        %p317 = scmp.lt.s32.totalorder %s21, 1
        %s318 = scalar_select %p317, %s21, 1
        %s319 = smul.addr %s318, 3
        %s320 = smul.addr %s319, 4
        %s321 = scalar_lea.vmem %s0, %s320
        %p322 = scmp.lt.s32.totalorder %s21, 1
        %s323 = scalar_select %p322, %s21, 1
        %s324 = smul.addr %s323, 3
        %s325 = smul.addr %s324, 4
        %s326 = scalar_lea.vmem %s7, %s325
        %p327 = scmp.lt.s32.totalorder %s21, 1
        %s328 = scalar_select %p327, %s21, 1
        %s329 = smul.addr %s328, 8
        %s330 = scalar_lea.vmem %s8, %s329
        %v332 = vld [vmem:[%s6] sm:$0x7]
        %v333 = vld [vmem:[%s1] sm:$0xff]
        %v334 = vld [vmem:[%s321] sm:$0xff]
        %v335 = vld [vmem:[%s321 + $0x8] sm:$0xf]
        %v336 = vunpack.c.l.bf16 %v334
        %v337 = vunpack.c.h.bf16 %v334
        %v338 = vunpack.c.l.bf16 %v335
        %340 = vset.pattern.permute.xlu0 0
        %341 = vperm.xlu0 %340, %v333
        %v342 = vpop.permute.xlu0 %341
        %v344 = vmul.f32 %v342, %v336
        %v345 = vmul.f32 %v342, %v337
        %v346 = vmul.f32 %v342, %v338
        %v347 = vld [vmem:[%s2] sm:$0xff]
        %349 = vset.pattern.permute.xlu0 0
        %350 = vperm.xlu0 %349, %v347
        %v351 = vpop.permute.xlu0 %350
        %v353 = vadd.f32 %v344, %v351
        %v354 = vadd.f32 %v345, %v351
        %v355 = vadd.f32 %v346, %v351
        %v356 = vmax.f32 %v353, 0.0
        %v357 = vmax.f32 %v354, 0.0
        %v358 = vmax.f32 %v355, 0.0
        %v360 = vlaneseq
        %v361 = vshrl.u32 %v360, 7
        %v362 = vsub.s32 0, %v361
        %v363 = vrot.slane %v332, %v362
        %v364 = vlaneseq
        %v365 = vshrl.u32 %v364, 7
        %v366 = vsub.s32 1, %v365
        %v367 = vrot.slane %v332, %v366
        %v368 = vlaneseq
        %v369 = vshrl.u32 %v368, 7
        %v370 = vsub.s32 2, %v369
        %v371 = vrot.slane %v332, %v370
        %v375 = vmul.f32 %v356, %v363
        %v376 = vmul.f32 %v357, %v367
        %v377 = vmul.f32 %v358, %v371
        %378 = vrot.lane.b32.xlu0 %v375, 19
        %v379 = vpop.permute.xlu0 %378
        %380 = vrot.lane.b32.xlu0 %v376, 19
        %v381 = vpop.permute.xlu0 %380
        %382 = vrot.lane.b32.xlu0 %v377, 19
        %v383 = vpop.permute.xlu0 %382
        %v384 = vlaneseq
        %v385 = vand.u32 %v384, 127
        %vm386 = vcmp.lt.s32.totalorder %v385, 19
        %v387 = vsel %vm386, %v381, %v383
        %v388 = vsel %vm386, %v379, %v381
        %v389 = vsel %vm386, %v383, %v379
        %390 = vrot.lane.b32.xlu0 %v375, 18
        %v391 = vpop.permute.xlu0 %390
        %392 = vrot.lane.b32.xlu0 %v376, 18
        %v393 = vpop.permute.xlu0 %392
        %394 = vrot.lane.b32.xlu0 %v377, 18
        %v395 = vpop.permute.xlu0 %394
        %vm396 = vcmp.lt.s32.totalorder %v385, 18
        %v397 = vsel %vm396, %v393, %v395
        %v398 = vsel %vm396, %v391, %v393
        %v399 = vsel %vm396, %v395, %v391
        %400 = vrot.lane.b32.xlu0 %v375, 17
        %v401 = vpop.permute.xlu0 %400
        %402 = vrot.lane.b32.xlu0 %v376, 17
        %v403 = vpop.permute.xlu0 %402
        %404 = vrot.lane.b32.xlu0 %v377, 17
        %v405 = vpop.permute.xlu0 %404
        %vm406 = vcmp.lt.s32.totalorder %v385, 17
        %v407 = vsel %vm406, %v403, %v405
        %v408 = vsel %vm406, %v401, %v403
        %v409 = vsel %vm406, %v405, %v401
        %410 = vrot.lane.b32.xlu0 %v375, 1
        %v411 = vpop.permute.xlu0 %410
        %412 = vrot.lane.b32.xlu0 %v376, 1
        %v413 = vpop.permute.xlu0 %412
        %414 = vrot.lane.b32.xlu0 %v377, 1
        %v415 = vpop.permute.xlu0 %414
        %vm416 = vcmp.lt.s32.totalorder %v385, 1
        %v417 = vsel %vm416, %v413, %v415
        %v418 = vsel %vm416, %v411, %v413
        %v419 = vsel %vm416, %v415, %v411
        %420 = vrot.lane.b32.xlu0 %v375, 127
        %v421 = vpop.permute.xlu0 %420
        %422 = vrot.lane.b32.xlu0 %v376, 127
        %v423 = vpop.permute.xlu0 %422
        %424 = vrot.lane.b32.xlu0 %v377, 127
        %v425 = vpop.permute.xlu0 %424
        %vm426 = vcmp.lt.s32.totalorder %v385, 127
        %v427 = vsel %vm426, %v423, %v425
        %v428 = vsel %vm426, %v421, %v423
        %v429 = vsel %vm426, %v425, %v421
        %430 = vrot.lane.b32.xlu0 %v375, 111
        %v431 = vpop.permute.xlu0 %430
        %432 = vrot.lane.b32.xlu0 %v376, 111
        %v433 = vpop.permute.xlu0 %432
        %434 = vrot.lane.b32.xlu0 %v377, 111
        %v435 = vpop.permute.xlu0 %434
        %vm436 = vcmp.lt.s32.totalorder %v385, 111
        %v437 = vsel %vm436, %v433, %v435
        %v438 = vsel %vm436, %v431, %v433
        %v439 = vsel %vm436, %v435, %v431
        %440 = vrot.lane.b32.xlu0 %v375, 110
        %v441 = vpop.permute.xlu0 %440
        %442 = vrot.lane.b32.xlu0 %v376, 110
        %v443 = vpop.permute.xlu0 %442
        %444 = vrot.lane.b32.xlu0 %v377, 110
        %v445 = vpop.permute.xlu0 %444
        %vm446 = vcmp.lt.s32.totalorder %v385, 110
        %v447 = vsel %vm446, %v443, %v445
        %v448 = vsel %vm446, %v441, %v443
        %v449 = vsel %vm446, %v445, %v441
        %450 = vrot.lane.b32.xlu0 %v375, 109
        %v451 = vpop.permute.xlu0 %450
        %452 = vrot.lane.b32.xlu0 %v376, 109
        %v453 = vpop.permute.xlu0 %452
        %454 = vrot.lane.b32.xlu0 %v377, 109
        %v455 = vpop.permute.xlu0 %454
        %vm456 = vcmp.lt.s32.totalorder %v385, 109
        %v457 = vsel %vm456, %v453, %v455
        %v458 = vsel %vm456, %v451, %v453
        %v459 = vsel %vm456, %v455, %v451
        %s460 = sld [smem:[#allocation2]]
        %v461 = vstv %s460
        %v462 = vmul.f32 %v461, %v389
        %v463 = vmul.f32 %v461, %v388
        %v464 = vmul.f32 %v461, %v387
        %v465 = vadd.f32 %v462, 0.0
        %v466 = vadd.f32 %v463, 0.0
        %v467 = vadd.f32 %v464, 0.0
        %s468 = sld [smem:[#allocation2 + $0x1]]
        %v469 = vstv %s468
        %v470 = vmul.f32 %v469, %v399
        %v471 = vmul.f32 %v469, %v398
        %v472 = vmul.f32 %v469, %v397
        %v473 = vadd.f32 %v465, %v470
        %v474 = vadd.f32 %v466, %v471
        %v475 = vadd.f32 %v467, %v472
        %s476 = sld [smem:[#allocation2 + $0x2]]
        %v477 = vstv %s476
        %v478 = vmul.f32 %v477, %v409
        %v479 = vmul.f32 %v477, %v408
        %v480 = vmul.f32 %v477, %v407
        %v481 = vadd.f32 %v473, %v478
        %v482 = vadd.f32 %v474, %v479
        %v483 = vadd.f32 %v475, %v480
        %s484 = sld [smem:[#allocation2 + $0x3]]
        %v485 = vstv %s484
        %v486 = vmul.f32 %v485, %v419
        %v487 = vmul.f32 %v485, %v418
        %v488 = vmul.f32 %v485, %v417
        %v489 = vadd.f32 %v481, %v486
        %v490 = vadd.f32 %v482, %v487
        %v491 = vadd.f32 %v483, %v488
        %s492 = sld [smem:[#allocation2 + $0x4]]
        %v493 = vstv %s492
        %v494 = vmul.f32 %v493, %v375
        %v495 = vmul.f32 %v493, %v376
        %v496 = vmul.f32 %v493, %v377
        %v497 = vadd.f32 %v489, %v494
        %v498 = vadd.f32 %v490, %v495
        %v499 = vadd.f32 %v491, %v496
        %s500 = sld [smem:[#allocation2 + $0x5]]
        %v501 = vstv %s500
        %v502 = vmul.f32 %v501, %v428
        %v503 = vmul.f32 %v501, %v427
        %v504 = vmul.f32 %v501, %v429
        %v505 = vadd.f32 %v497, %v502
        %v506 = vadd.f32 %v498, %v503
        %v507 = vadd.f32 %v499, %v504
        %s508 = sld [smem:[#allocation2 + $0x6]]
        %v509 = vstv %s508
        %v510 = vmul.f32 %v509, %v438
        %v511 = vmul.f32 %v509, %v437
        %v512 = vmul.f32 %v509, %v439
        %v513 = vadd.f32 %v505, %v510
        %v514 = vadd.f32 %v506, %v511
        %v515 = vadd.f32 %v507, %v512
        %s516 = sld [smem:[#allocation2 + $0x7]]
        %v517 = vstv %s516
        %v518 = vmul.f32 %v517, %v448
        %v519 = vmul.f32 %v517, %v447
        %v520 = vmul.f32 %v517, %v449
        %v521 = vadd.f32 %v513, %v518
        %v522 = vadd.f32 %v514, %v519
        %v523 = vadd.f32 %v515, %v520
        %s524 = sld [smem:[#allocation2 + $0x8]]
        %v525 = vstv %s524
        %v526 = vmul.f32 %v525, %v458
        %v527 = vmul.f32 %v525, %v457
        %v528 = vmul.f32 %v525, %v459
        %v529 = vadd.f32 %v521, %v526
        %v530 = vadd.f32 %v522, %v527
        %v531 = vadd.f32 %v523, %v528
        %v532 = vmul.f32 %v529, %v363
        %v533 = vmul.f32 %v530, %v367
        %v534 = vmul.f32 %v531, %v371
        %535 = vrot.lane.b32.xlu0 %v532, 19
        %v536 = vpop.permute.xlu0 %535
        %537 = vrot.lane.b32.xlu0 %v533, 19
        %v538 = vpop.permute.xlu0 %537
        %539 = vrot.lane.b32.xlu0 %v534, 19
        %v540 = vpop.permute.xlu0 %539
        %v541 = vsel %vm386, %v538, %v540
        %v542 = vsel %vm386, %v536, %v538
        %v543 = vsel %vm386, %v540, %v536
        %544 = vrot.lane.b32.xlu0 %v532, 18
        %v545 = vpop.permute.xlu0 %544
        %546 = vrot.lane.b32.xlu0 %v533, 18
        %v547 = vpop.permute.xlu0 %546
        %548 = vrot.lane.b32.xlu0 %v534, 18
        %v549 = vpop.permute.xlu0 %548
        %v550 = vsel %vm396, %v547, %v549
        %v551 = vsel %vm396, %v545, %v547
        %v552 = vsel %vm396, %v549, %v545
        %553 = vrot.lane.b32.xlu0 %v532, 17
        %v554 = vpop.permute.xlu0 %553
        %555 = vrot.lane.b32.xlu0 %v533, 17
        %v556 = vpop.permute.xlu0 %555
        %557 = vrot.lane.b32.xlu0 %v534, 17
        %v558 = vpop.permute.xlu0 %557
        %v559 = vsel %vm406, %v556, %v558
        %v560 = vsel %vm406, %v554, %v556
        %v561 = vsel %vm406, %v558, %v554
        %562 = vrot.lane.b32.xlu0 %v532, 1
        %v563 = vpop.permute.xlu0 %562
        %564 = vrot.lane.b32.xlu0 %v533, 1
        %v565 = vpop.permute.xlu0 %564
        %566 = vrot.lane.b32.xlu0 %v534, 1
        %v567 = vpop.permute.xlu0 %566
        %v568 = vsel %vm416, %v565, %v567
        %v569 = vsel %vm416, %v563, %v565
        %v570 = vsel %vm416, %v567, %v563
        %571 = vrot.lane.b32.xlu0 %v532, 127
        %v572 = vpop.permute.xlu0 %571
        %573 = vrot.lane.b32.xlu0 %v533, 127
        %v574 = vpop.permute.xlu0 %573
        %575 = vrot.lane.b32.xlu0 %v534, 127
        %v576 = vpop.permute.xlu0 %575
        %v577 = vsel %vm426, %v574, %v576
        %v578 = vsel %vm426, %v572, %v574
        %v579 = vsel %vm426, %v576, %v572
        %580 = vrot.lane.b32.xlu0 %v532, 111
        %v581 = vpop.permute.xlu0 %580
        %582 = vrot.lane.b32.xlu0 %v533, 111
        %v583 = vpop.permute.xlu0 %582
        %584 = vrot.lane.b32.xlu0 %v534, 111
        %v585 = vpop.permute.xlu0 %584
        %v586 = vsel %vm436, %v583, %v585
        %v587 = vsel %vm436, %v581, %v583
        %v588 = vsel %vm436, %v585, %v581
        %589 = vrot.lane.b32.xlu0 %v532, 110
        %v590 = vpop.permute.xlu0 %589
        %591 = vrot.lane.b32.xlu0 %v533, 110
        %v592 = vpop.permute.xlu0 %591
        %593 = vrot.lane.b32.xlu0 %v534, 110
        %v594 = vpop.permute.xlu0 %593
        %v595 = vsel %vm446, %v592, %v594
        %v596 = vsel %vm446, %v590, %v592
        %v597 = vsel %vm446, %v594, %v590
        %598 = vrot.lane.b32.xlu0 %v532, 109
        %v599 = vpop.permute.xlu0 %598
        %600 = vrot.lane.b32.xlu0 %v533, 109
        %v601 = vpop.permute.xlu0 %600
        %602 = vrot.lane.b32.xlu0 %v534, 109
        %v603 = vpop.permute.xlu0 %602
        %v604 = vsel %vm456, %v601, %v603
        %v605 = vsel %vm456, %v599, %v601
        %v606 = vsel %vm456, %v603, %v599
        %v607 = vpack.c.bf16 %v552, %v543
        %v608 = vpack.c.bf16 %v551, %v542
        %v609 = vpack.c.bf16 %v550, %v541
        %v610 = vpack.c.bf16 %v570, %v561
        %v611 = vpack.c.bf16 %v569, %v560
        %v612 = vpack.c.bf16 %v568, %v559
        %v613 = vpack.c.bf16 %v578, %v532
        %v614 = vpack.c.bf16 %v577, %v533
        %v615 = vpack.c.bf16 %v579, %v534
        %v616 = vpack.c.bf16 %v596, %v587
        %v617 = vpack.c.bf16 %v595, %v586
        %v618 = vpack.c.bf16 %v597, %v588
        %v619 = vpack.c.bf16 %v605, %v605
        %v620 = vpack.c.bf16 %v604, %v604
        %v621 = vpack.c.bf16 %v606, %v606
        %v622 = vld [vmem:[%s5] sm:$0xf]
        %v623 = vpack.c.bf16 %v399, %v389
        %v624 = vpack.c.bf16 %v398, %v388
        %v625 = vpack.c.bf16 %v397, %v387
        %v626 = vpack.c.bf16 %v419, %v409
        %v627 = vpack.c.bf16 %v418, %v408
        %v628 = vpack.c.bf16 %v417, %v407
        %v629 = vpack.c.bf16 %v428, %v375
        %v630 = vpack.c.bf16 %v427, %v376
        %v631 = vpack.c.bf16 %v429, %v377
        %v632 = vpack.c.bf16 %v448, %v438
        %v633 = vpack.c.bf16 %v447, %v437
        %v634 = vpack.c.bf16 %v449, %v439
        %v635 = vpack.c.bf16 %v458, %v458
        %v636 = vpack.c.bf16 %v457, %v457
        %v637 = vpack.c.bf16 %v459, %v459
        %v638 = vld [vmem:[%s4] sm:$0xf]
        %vm639 = vcmask 588800
        %v641 = vsel %vm639, %v638, 0
        %vm643 = vcmask 1043456
        %v645 = vsel %vm643, %v619, 0
        %v648 = vsel %vm643, %v620, 0
        %v651 = vsel %vm643, %v621, 0
        %653 = vmatprep.subr.bf16.mxu0 %v608
        %654 = vmatpush1.bf16.msra.mxu0 %v607
        %655 = vmatprep.subr.bf16.mxu0 %v611
        %656 = vmatpush1.bf16.msra.mxu0 %v610
        %657 = vmatprep.subr.bf16.mxu0 %v614
        %658 = vmatpush1.bf16.msra.mxu0 %v613
        %659 = vmatprep.subr.bf16.mxu0 %v617
        %660 = vmatpush1.bf16.msra.mxu0 %v616
        %661 = vmatprep.subr.bf16.mxu0 %v648
        %662 = vmatpush1.bf16.msra.mxu0 %v645
        %663 = vmatprep.subr.bf16.mxu0 0
        %664 = vmatpush1.bf16.msra.mxu0 0
        %665 = vmatprep.subr.bf16.mxu0 0
        %666 = vmatpush1.bf16.msra.mxu0 0
        %667 = vmatprep.subr.bf16.mxu0 0
        %668 = vmatpush1.bf16.msra.mxu0 0
        %669 = vmatprep.subr.bf16.mxu0 0
        %670 = vmatpush1.bf16.msra.mxu0 0
        %671 = vmatprep.subr.bf16.mxu0 0
        %672 = vmatpush1.bf16.msra.mxu0 0
        %673 = vmatprep.subr.bf16.mxu0 0
        %674 = vmatpush1.bf16.msra.mxu0 0
        %675 = vmatprep.subr.bf16.mxu0 0
        %676 = vmatpush1.bf16.msra.mxu0 0
        %677 = vmatprep.subr.bf16.mxu0 0
        %678 = vmatpush1.bf16.msra.mxu0 0
        %679 = vmatprep.subr.bf16.mxu0 0
        %680 = vmatpush1.bf16.msra.mxu0 0
        %681 = vmatprep.subr.bf16.mxu0 0
        %682 = vmatpush1.bf16.msra.mxu0 0
        %683 = vmatprep.subr.bf16.mxu0 0
        %684 = vmatpush1.bf16.msra.mxu0 0
        %685 = vmatprep.mubr.bf16.mxu0 0
        %686 = vmatmul.mubr.bf16.gmra.mrb[0].mxu0 %v641
        %v687 = vpop.f32.mrb[0].mxu0
        %v688 = vadd.f32 0.0, %v687
        %v689 = vpop.f32.mrb[0].mxu0
        %v690 = vadd.f32 0.0, %v689
        %v691 = vpop.f32.mrb[0].mxu0
        %v692 = vpop.f32.mrb[0].mxu0
        %693 = vdwg.mxu0
        %694 = vmatprep.subr.bf16.mxu0 0
        %695 = vmatpush1.bf16.msra.mxu0 %v609
        %696 = vmatprep.subr.bf16.mxu0 0
        %697 = vmatpush1.bf16.msra.mxu0 %v612
        %698 = vmatprep.subr.bf16.mxu0 0
        %699 = vmatpush1.bf16.msra.mxu0 %v615
        %700 = vmatprep.subr.bf16.mxu0 0
        %701 = vmatpush1.bf16.msra.mxu0 %v618
        %702 = vmatprep.subr.bf16.mxu0 0
        %703 = vmatpush1.bf16.msra.mxu0 %v651
        %704 = vmatprep.subr.bf16.mxu0 0
        %705 = vmatpush1.bf16.msra.mxu0 0
        %706 = vmatprep.subr.bf16.mxu0 0
        %707 = vmatpush1.bf16.msra.mxu0 0
        %708 = vmatprep.subr.bf16.mxu0 0
        %709 = vmatpush1.bf16.msra.mxu0 0
        %710 = vmatprep.subr.bf16.mxu0 0
        %711 = vmatpush1.bf16.msra.mxu0 0
        %712 = vmatprep.subr.bf16.mxu0 0
        %713 = vmatpush1.bf16.msra.mxu0 0
        %714 = vmatprep.subr.bf16.mxu0 0
        %715 = vmatpush1.bf16.msra.mxu0 0
        %716 = vmatprep.subr.bf16.mxu0 0
        %717 = vmatpush1.bf16.msra.mxu0 0
        %718 = vmatprep.subr.bf16.mxu0 0
        %719 = vmatpush1.bf16.msra.mxu0 0
        %720 = vmatprep.subr.bf16.mxu0 0
        %721 = vmatpush1.bf16.msra.mxu0 0
        %722 = vmatprep.subr.bf16.mxu0 0
        %723 = vmatpush1.bf16.msra.mxu0 0
        %724 = vmatprep.subr.bf16.mxu0 0
        %725 = vmatpush1.bf16.msra.mxu0 0
        %726 = vmatprep.mubr.bf16.mxu0 0
        %727 = vmatmul.mubr.bf16.gmra.mrb[0].mxu0 %v641
        %v728 = vpop.f32.mrb[0].mxu0
        %v729 = vadd.f32 0.0, %v728
        %v730 = vpop.f32.mrb[0].mxu0
        %v731 = vpop.f32.mrb[0].mxu0
        %v732 = vpop.f32.mrb[0].mxu0
        %733 = vdwg.mxu0
        %v735 = vsel %vm639, %v622, 0
        %v738 = vsel %vm643, %v635, 0
        %v741 = vsel %vm643, %v636, 0
        %v744 = vsel %vm643, %v637, 0
        %746 = vmatprep.subr.bf16.mxu0 %v624
        %747 = vmatpush1.bf16.msra.mxu0 %v623
        %748 = vmatprep.subr.bf16.mxu0 %v627
        %749 = vmatpush1.bf16.msra.mxu0 %v626
        %750 = vmatprep.subr.bf16.mxu0 %v630
        %751 = vmatpush1.bf16.msra.mxu0 %v629
        %752 = vmatprep.subr.bf16.mxu0 %v633
        %753 = vmatpush1.bf16.msra.mxu0 %v632
        %754 = vmatprep.subr.bf16.mxu0 %v741
        %755 = vmatpush1.bf16.msra.mxu0 %v738
        %756 = vmatprep.subr.bf16.mxu0 0
        %757 = vmatpush1.bf16.msra.mxu0 0
        %758 = vmatprep.subr.bf16.mxu0 0
        %759 = vmatpush1.bf16.msra.mxu0 0
        %760 = vmatprep.subr.bf16.mxu0 0
        %761 = vmatpush1.bf16.msra.mxu0 0
        %762 = vmatprep.subr.bf16.mxu0 0
        %763 = vmatpush1.bf16.msra.mxu0 0
        %764 = vmatprep.subr.bf16.mxu0 0
        %765 = vmatpush1.bf16.msra.mxu0 0
        %766 = vmatprep.subr.bf16.mxu0 0
        %767 = vmatpush1.bf16.msra.mxu0 0
        %768 = vmatprep.subr.bf16.mxu0 0
        %769 = vmatpush1.bf16.msra.mxu0 0
        %770 = vmatprep.subr.bf16.mxu0 0
        %771 = vmatpush1.bf16.msra.mxu0 0
        %772 = vmatprep.subr.bf16.mxu0 0
        %773 = vmatpush1.bf16.msra.mxu0 0
        %774 = vmatprep.subr.bf16.mxu0 0
        %775 = vmatpush1.bf16.msra.mxu0 0
        %776 = vmatprep.subr.bf16.mxu0 0
        %777 = vmatpush1.bf16.msra.mxu0 0
        %778 = vmatprep.mubr.bf16.mxu0 0
        %779 = vmatmul.mubr.bf16.gmra.mrb[0].mxu0 %v735
        %v780 = vpop.f32.mrb[0].mxu0
        %v781 = vadd.f32 %v688, %v780
        %v782 = vpop.f32.mrb[0].mxu0
        %v783 = vadd.f32 %v690, %v782
        %v784 = vpop.f32.mrb[0].mxu0
        %v785 = vpop.f32.mrb[0].mxu0
        %786 = vdwg.mxu0
        %787 = vmatprep.subr.bf16.mxu0 0
        %788 = vmatpush1.bf16.msra.mxu0 %v625
        %789 = vmatprep.subr.bf16.mxu0 0
        %790 = vmatpush1.bf16.msra.mxu0 %v628
        %791 = vmatprep.subr.bf16.mxu0 0
        %792 = vmatpush1.bf16.msra.mxu0 %v631
        %793 = vmatprep.subr.bf16.mxu0 0
        %794 = vmatpush1.bf16.msra.mxu0 %v634
        %795 = vmatprep.subr.bf16.mxu0 0
        %796 = vmatpush1.bf16.msra.mxu0 %v744
        %797 = vmatprep.subr.bf16.mxu0 0
        %798 = vmatpush1.bf16.msra.mxu0 0
        %799 = vmatprep.subr.bf16.mxu0 0
        %800 = vmatpush1.bf16.msra.mxu0 0
        %801 = vmatprep.subr.bf16.mxu0 0
        %802 = vmatpush1.bf16.msra.mxu0 0
        %803 = vmatprep.subr.bf16.mxu0 0
        %804 = vmatpush1.bf16.msra.mxu0 0
        %805 = vmatprep.subr.bf16.mxu0 0
        %806 = vmatpush1.bf16.msra.mxu0 0
        %807 = vmatprep.subr.bf16.mxu0 0
        %808 = vmatpush1.bf16.msra.mxu0 0
        %809 = vmatprep.subr.bf16.mxu0 0
        %810 = vmatpush1.bf16.msra.mxu0 0
        %811 = vmatprep.subr.bf16.mxu0 0
        %812 = vmatpush1.bf16.msra.mxu0 0
        %813 = vmatprep.subr.bf16.mxu0 0
        %814 = vmatpush1.bf16.msra.mxu0 0
        %815 = vmatprep.subr.bf16.mxu0 0
        %816 = vmatpush1.bf16.msra.mxu0 0
        %817 = vmatprep.subr.bf16.mxu0 0
        %818 = vmatpush1.bf16.msra.mxu0 0
        %819 = vmatprep.mubr.bf16.mxu0 0
        %820 = vmatmul.mubr.bf16.gmra.mrb[0].mxu0 %v735
        %v821 = vpop.f32.mrb[0].mxu0
        %v822 = vadd.f32 %v729, %v821
        %v823 = vpop.f32.mrb[0].mxu0
        %v824 = vpop.f32.mrb[0].mxu0
        %v825 = vpop.f32.mrb[0].mxu0
        %826 = vdwg.mxu0
        %v827 = vmul.f32 %v781, %v363
        %v828 = vmul.f32 %v783, %v367
        %v829 = vmul.f32 %v822, %v371
        %v830 = vpack.c.bf16 %v827, %v827
        %v831 = vpack.c.bf16 %v828, %v828
        %v832 = vpack.c.bf16 %v829, %v829
        %v836 = vunpack.c.l.b16 %v830
        %v837 = vunpack.c.l.b16 %v831
        %v838 = vunpack.c.l.b16 %v832
        %v839 = vpack.c.b16 %v837, %v836
        %v840 = vpack.c.b16 %v838, %v838
        %843 = vst [vmem:[%s326] sm:$0xff] %v839
        %844 = vst [vmem:[%s326 + $0x8] sm:$0xf] %v840
        %v845 = vadd.f32 %v827, %v828
        %v846 = vadd.f32 %v845, %v829
        %847 = vadd.xlane.f32.xlu0 %v846
        %v848 = vpop.xlane.xlu0 %847
        %v849 = vmul.f32 %v827, %v827
        %v850 = vmul.f32 %v828, %v828
        %v851 = vmul.f32 %v829, %v829
        %v852 = vadd.f32 %v849, %v850
        %v853 = vadd.f32 %v852, %v851
        %854 = vadd.xlane.f32.xlu0 %v853
        %v855 = vpop.xlane.xlu0 %854
        %vm856 = vcmask 7168
        %v857 = vsel %vm856, %v848, %v855
        %vm858 = vcmask 15360
        %859 = vst.msk [vmem:[%s330] sm:$0xff] %vm858, %v857
        %p860 = scmp.lt.s32.totalorder %s21, 1
        %s861 = scalar_select %p860, %s21, 1
        %s862 = smul.addr %s861, 3
        %s863 = smul.addr %s862, 4
        %s864 = scalar_lea.vmem %s7, %s863
        %p865 = scmp.lt.s32.totalorder %s21, 1
        %s866 = scalar_select %p865, %s21, 1
        %s867 = smul.addr %s866, 8
        %s868 = scalar_lea.vmem %s8, %s867
        // Predicated region
        $region53: #{conv2d_with_gauss3_forward.4} parent=47 // pred_check
          %p869 = pneg %p191
        $region54: #{conv2d_with_gauss3_forward.4} parent=47 // pred_check_branch
          %871 = sbr.rel (%p869) target = $region56
        $region55: #{conv2d_with_gauss3_forward.4} parent=47 // pred_region
          _
        $region56: #{conv2d_with_gauss3_forward.4} parent=47 // pred_fallthru
          _
        // Predicated region
        $region57: #{conv2d_with_gauss3_forward.4} parent=47 // pred_check
          %p872 = pneg %p217
        $region58: #{conv2d_with_gauss3_forward.4} parent=47 // pred_check_branch
          %874 = sbr.rel (%p872) target = $region60
        $region59: #{conv2d_with_gauss3_forward.4} parent=47 // pred_region
          _
        $region60: #{conv2d_with_gauss3_forward.4} parent=47 // pred_fallthru
          _
      $region48: #{conv2d_with_gauss3_forward.4} parent=5 // pred_fallthru
        _
      %p875 = scmp.le.s32.totalorder 2, %s16
      // Predicated region
      $region61: #{conv2d_with_gauss3_forward.4} parent=5 // pred_check
        %p876 = pneg %p875
      $region62: #{conv2d_with_gauss3_forward.4} parent=5 // pred_check_branch
        %878 = sbr.rel (%p876) target = $region64
      $region63: #{conv2d_with_gauss3_forward.4} parent=5 // pred_region
        %s879 = ssub.s32 %s16, 2
        // Predicated region
        $region65: #{conv2d_with_gauss3_forward.4} parent=63 // pred_check
          %p880 = pneg %p197
        $region66: #{conv2d_with_gauss3_forward.4} parent=63 // pred_check_branch
          %882 = sbr.rel (%p880) target = $region68
        $region67: #{conv2d_with_gauss3_forward.4} parent=63 // pred_region
          %p883 = scmp.lt.s32.totalorder %s22, 1
          %s884 = scalar_select %p883, %s22, 1
          %s885 = smul.addr %s884, 3
          %s886 = smul.addr %s885, 4
          %s887 = scalar_lea.vmem %s7, %s886
        $region68: #{conv2d_with_gauss3_forward.4} parent=63 // pred_fallthru
          _
        // Predicated region
        $region69: #{conv2d_with_gauss3_forward.4} parent=63 // pred_check
          %p888 = pneg %p223
        $region70: #{conv2d_with_gauss3_forward.4} parent=63 // pred_check_branch
          %890 = sbr.rel (%p888) target = $region72
        $region71: #{conv2d_with_gauss3_forward.4} parent=63 // pred_region
          %p891 = scmp.lt.s32.totalorder %s22, 1
          %s892 = scalar_select %p891, %s22, 1
          %s893 = smul.addr %s892, 8
          %s894 = scalar_lea.vmem %s8, %s893
        $region72: #{conv2d_with_gauss3_forward.4} parent=63 // pred_fallthru
          _
      $region64: #{conv2d_with_gauss3_forward.4} parent=5 // pred_fallthru
        _
    $region6: #{conv2d_with_gauss3_forward.4} parent=1 // loop_footer
      %s20 = sadd.s32 1, %s16
    $region7: #{conv2d_with_gauss3_forward.4} parent=1 // loop_footer_branch
      %15 = sbr.rel target = $region3
    $region8: #{conv2d_with_gauss3_forward.4} parent=1 // loop_exit
      _
    %895 = vsyncpa [#allocation3], 1
    %s896 = scalar_lea.sflag [#allocation3], 1
    %897 = vsyncpa %s896, 1

</llo_original>
